<compile_context>
chip_gen: v5e
topology: v5e:2x2
jax: 0.10.0
libtpu: 0.0.40
codegen_flags: <defaults>
</compile_context>

<pallas_src>
import functools

import jax
import jax.numpy as jnp
from jax import lax
from jax.experimental import pallas as pl
from jax.experimental.pallas import tpu as pltpu

BN_EPS = 1e-5
LANE = 128


# --------------------------------------------------------------------------- #
# Kernel 1/2: (optional folded BN + ReLU on the input) -> 3x3 conv via im2col  #
# (single bf16 MXU matmul) -> per-tile BatchNorm partial statistics.           #
# --------------------------------------------------------------------------- #
def _conv_bn_stats_kernel(x_ref, w_ref, scale_ref, shift_ref,     # inputs
                          y_ref, mean_ref, m2_ref,                # outputs
                          pad_ref, patch_ref,                     # VMEM scratch
                          *, pre_relu):
    _, H, W, C = x_ref.shape
    M = H * W

    # Elementwise pre-normalization of the input tile.  For the first conv the
    # wrapper passes scale=1 / shift=0 (identity); for the second conv it is
    # the folded BN1 affine followed by ReLU.
    scale = scale_ref[...].reshape(1, 1, 1, C)
    shift = shift_ref[...].reshape(1, 1, 1, C)
    xn = x_ref[...] * scale + shift
    if pre_relu:
        xn = jnp.maximum(xn, 0.0)

    # Zero the spatial halo and the unused tail lanes of the patch scratch
    # (scratch is re-zeroed every grid step: it must not rely on persistence
    # because the "parallel" axis may be split across TensorCores).
    pad_ref[...] = jnp.zeros(pad_ref.shape, pad_ref.dtype)
    patch_ref[...] = jnp.zeros(patch_ref.shape, patch_ref.dtype)
    pad_ref[:, 1:H + 1, 1:W + 1, :] = xn

    # im2col: patch[m, tap*C + c] = x_pad[h+kh, w+kw, c],  tap = kh*3 + kw.
    # One sublane-shifted window per kw (3 relayouts, not 9); the kh shift is a
    # cheap leading-dim slice; W % 8 == 0 keeps the reshape layout-free.
    for kw in range(3):
        xs = pad_ref[:, :, kw:kw + W, :]                  # (1, H+2, W, C)
        for kh in range(3):
            tap = kh * 3 + kw
            chunk = xs[:, kh:kh + H, :, :].reshape(M, C)
            patch_ref[:, tap * C:(tap + 1) * C] = chunk

    # ONE MXU matmul per conv: (M, 128) x (128, 128), bf16 operands, f32 acc.
    y = jnp.dot(patch_ref[...].astype(jnp.bfloat16), w_ref[...],
                preferred_element_type=jnp.float32)       # (M, 128) f32

    # Per-tile BatchNorm partials (two-pass: mean, then centered M2).  The
    # cross-tile combine (Chan's formula) happens outside the kernel.
    mean_t = jnp.sum(y, axis=0, keepdims=True) * (1.0 / M)
    d = y - mean_t
    mean_ref[...] = mean_t.reshape(mean_ref.shape)
    m2_ref[...] = jnp.sum(d * d, axis=0, keepdims=True).reshape(m2_ref.shape)

    # Raw (pre-BN) conv output; only the real C channels go back to HBM
    # (narrow masked store, but 16x less HBM traffic than a 128-lane slab).
    y_ref[...] = y[:, :C].reshape(1, H, W, C)


# --------------------------------------------------------------------------- #
# Kernel 3: folded BN2 affine + residual add + ReLU (elementwise).             #
# --------------------------------------------------------------------------- #
def _bn_add_relu_kernel(y_ref, x_ref, scale_ref, shift_ref, out_ref):
    C = scale_ref.shape[-1]
    s = scale_ref[...].reshape(1, 1, 1, C)
    t = shift_ref[...].reshape(1, 1, 1, C)
    out_ref[...] = jnp.maximum(y_ref[...] * s + t + x_ref[...], 0.0)


# --------------------------------------------------------------------------- #
# Wrapper                                                                      #
# --------------------------------------------------------------------------- #
def _prep_w(w, C):
    # torch (Cout, Cin, 3, 3) -> im2col matrix: row = tap*C + cin, col = cout,
    # zero-padded to (128, 128) and stored as bf16 (halves weight VMEM).
    w_t = jnp.transpose(w.astype(jnp.float32), (2, 3, 1, 0)).reshape(9 * C, C)
    return jnp.zeros((LANE, LANE), jnp.bfloat16).at[:9 * C, :C].set(
        w_t.astype(jnp.bfloat16))


def _combine_bn(mean_p, m2_p, gamma, beta, n_tile, C):
    # Chan's parallel-variance combine of the per-tile (mean, M2) partials,
    # then fold the BN into a single (scale, shift) affine.  Tiny (C,)-sized
    # f32 ops in plain JAX.
    mean_t = mean_p[:, 0, :C]                              # (num_tiles, C)
    m2_t = m2_p[:, 0, :C]
    n = n_tile * mean_t.shape[0]
    mean = jnp.mean(mean_t, axis=0)                        # (C,)
    m2 = jnp.sum(m2_t, axis=0) + n_tile * jnp.sum((mean_t - mean) ** 2, axis=0)
    var = m2 / n                                           # biased, like torch BN
    scale = gamma.astype(jnp.float32) * lax.rsqrt(var + BN_EPS)
    shift = beta.astype(jnp.float32) - mean * scale
    return scale.reshape(1, C), shift.reshape(1, C)


def _conv_call(B, H, W, C, *, pre_relu):
    M = H * W
    kern = functools.partial(_conv_bn_stats_kernel, pre_relu=pre_relu)
    return pl.pallas_call(
        kern,
        out_shape=(jax.ShapeDtypeStruct((B, H, W, C), jnp.float32),
                   jax.ShapeDtypeStruct((B, 1, LANE), jnp.float32),
                   jax.ShapeDtypeStruct((B, 1, LANE), jnp.float32)),
        grid=(B,),
        in_specs=[pl.BlockSpec((1, H, W, C), lambda b: (b, 0, 0, 0)),
                  pl.BlockSpec((LANE, LANE), lambda b: (0, 0)),   # weights resident
                  pl.BlockSpec((1, C), lambda b: (0, 0)),
                  pl.BlockSpec((1, C), lambda b: (0, 0))],
        out_specs=(pl.BlockSpec((1, H, W, C), lambda b: (b, 0, 0, 0)),
                   pl.BlockSpec((1, 1, LANE), lambda b: (b, 0, 0)),
                   pl.BlockSpec((1, 1, LANE), lambda b: (b, 0, 0))),
        scratch_shapes=[pltpu.VMEM((1, H + 2, W + 2, C), jnp.float32),
                        pltpu.VMEM((M, LANE), jnp.float32)],
        compiler_params=pltpu.CompilerParams(
            dimension_semantics=("parallel",),
            vmem_limit_bytes=32 * 1024 * 1024),
    )


def _bn_add_relu_call(B, H, W, C):
    return pl.pallas_call(
        _bn_add_relu_kernel,
        out_shape=jax.ShapeDtypeStruct((B, H, W, C), jnp.float32),
        grid=(B,),
        in_specs=[pl.BlockSpec((1, H, W, C), lambda b: (b, 0, 0, 0)),
                  pl.BlockSpec((1, H, W, C), lambda b: (b, 0, 0, 0)),
                  pl.BlockSpec((1, C), lambda b: (0, 0)),
                  pl.BlockSpec((1, C), lambda b: (0, 0))],
        out_specs=pl.BlockSpec((1, H, W, C), lambda b: (b, 0, 0, 0)),
        compiler_params=pltpu.CompilerParams(
            dimension_semantics=("parallel",)),
    )


def residual_block_pallas(x_nchw, params):
    """x_nchw: (B, C, H, W) float32; params in torch layouts (training-mode BN)."""
    w1, b1, g1, be1, w2, b2, g2, be2 = params
    # Conv biases are cancelled exactly by the training-mode BatchNorm mean
    # subtraction, so they are not passed to the kernels.
    # TODO(synk): eval-mode BN (running stats) would need the biases back.
    del b1, b2

    B, C, H, W = x_nchw.shape
    assert W % 8 == 0, "W must be a multiple of 8 (layout-free reshapes)"
    assert 9 * C <= LANE, "im2col tap fusion requires 9*C <= 128"

    # NCHW -> NHWC once; a full model would keep activations NHWC end to end.
    x = jnp.transpose(x_nchw, (0, 2, 3, 1)).astype(jnp.float32)

    ones_c = jnp.ones((1, C), jnp.float32)
    zeros_c = jnp.zeros((1, C), jnp.float32)
    n_tile = H * W

    # Phase 1: conv1 (+ per-tile BN1 partial stats).
    y1, mean1_p, m21_p = _conv_call(B, H, W, C, pre_relu=False)(
        x, _prep_w(w1, C), ones_c, zeros_c)
    scale1, shift1 = _combine_bn(mean1_p, m21_p, g1, be1, n_tile, C)

    # Phase 2: BN1 + ReLU + conv2 fused in the same kernel (+ BN2 partials).
    y2, mean2_p, m22_p = _conv_call(B, H, W, C, pre_relu=True)(
        y1, _prep_w(w2, C), scale1, shift1)
    scale2, shift2 = _combine_bn(mean2_p, m22_p, g2, be2, n_tile, C)

    # Phase 3: BN2 + residual add + ReLU.
    out = _bn_add_relu_call(B, H, W, C)(y2, x, scale2, shift2)
    return jnp.transpose(out, (0, 3, 1, 2))


# ----------------------- pure-JAX reference (for checking) ------------------ #
def residual_block_ref(x_nchw, params):
    w1, b1, g1, be1, w2, b2, g2, be2 = params

    def conv(x, w, b):
        y = lax.conv_general_dilated(
            x, w, window_strides=(1, 1), padding=((1, 1), (1, 1)),
            dimension_numbers=("NCHW", "OIHW", "NCHW"))
        return y + b[None, :, None, None]

    def bn(x, g, be):
        mean = jnp.mean(x, axis=(0, 2, 3), keepdims=True)
        var = jnp.mean((x - mean) ** 2, axis=(0, 2, 3), keepdims=True)
        return ((x - mean) * lax.rsqrt(var + BN_EPS)
                * g[None, :, None, None] + be[None, :, None, None])

    out = jax.nn.relu(bn(conv(x_nchw, w1, b1), g1, be1))
    out = bn(conv(out, w2, b2), g2, be2)
    return jax.nn.relu(out + x_nchw)


if __name__ == "__main__":
    B, C, H, W = 2, 8, 16, 16   # in_channels == out_channels so residual adds

    key = jax.random.PRNGKey(0)
    k = jax.random.split(key, 6)
    x = jax.random.normal(k[0], (B, C, H, W), jnp.float32)

    # Deterministic synthetic parameters (torch layouts):
    w1 = 0.1 * jax.random.normal(k[1], (C, C, 3, 3), jnp.float32)
    b1 = 0.1 * jax.random.normal(k[2], (C,), jnp.float32)
    g1 = jnp.ones((C,), jnp.float32)            # BatchNorm default weight=1
    be1 = jnp.zeros((C,), jnp.float32)          # BatchNorm default bias=0
    w2 = 0.1 * jax.random.normal(k[3], (C, C, 3, 3), jnp.float32)
    b2 = 0.1 * jax.random.normal(k[4], (C,), jnp.float32)
    g2 = jnp.ones((C,), jnp.float32)
    be2 = jnp.zeros((C,), jnp.float32)
    params = (w1, b1, g1, be1, w2, b2, g2, be2)

    out = residual_block_pallas(x, params)
    out = jax.block_until_ready(out)

    ref = residual_block_ref(x, params)
    assert out.shape == (B, C, H, W)
    # bf16 MXU operands -> compare against the f32 reference at bf16-level tolerance.
    assert jnp.allclose(out, ref, atol=5e-2, rtol=2e-2), (
        float(jnp.max(jnp.abs(out - ref))))

    print("KERNEL_OK")
</pallas_src>

<mosaic_0001>
module attributes {stable_mosaic.version = 11 : i64} {
  func.func @_conv_bn_stats_kernel(%arg0: i32, %arg1: memref<1x16x16x8xf32, #tpu.memory_space<vmem>>, %arg2: memref<128x128xbf16, #tpu.memory_space<vmem>>, %arg3: memref<1x8xf32, #tpu.memory_space<vmem>>, %arg4: memref<1x8xf32, #tpu.memory_space<vmem>>, %arg5: memref<1x16x16x8xf32, #tpu.memory_space<vmem>>, %arg6: memref<1x1x128xf32, #tpu.memory_space<vmem>>, %arg7: memref<1x1x128xf32, #tpu.memory_space<vmem>>, %arg8: memref<1x18x18x8xf32, #tpu.memory_space<vmem>>, %arg9: memref<256x128xf32, #tpu.memory_space<vmem>>) attributes {dimension_semantics = [#tpu.dimension_semantics<parallel>], iteration_bounds = array<i64: 2>, scalar_prefetch = 0 : i64, scratch_operands = 2 : i64, tpu.core_type = #tpu.core_type<tc>, window_params = [{transform_indices = @transform_0, window_bounds = array<i64: 1, 16, 16, 8>}, {pipeline_mode = #tpu.pipeline_mode<synchronous>, transform_indices = @transform_1, window_bounds = array<i64: 128, 128>}, {pipeline_mode = #tpu.pipeline_mode<synchronous>, transform_indices = @transform_2, window_bounds = array<i64: 1, 8>}, {pipeline_mode = #tpu.pipeline_mode<synchronous>, transform_indices = @transform_3, window_bounds = array<i64: 1, 8>}, {transform_indices = @transform_4, window_bounds = array<i64: 1, 16, 16, 8>}, {transform_indices = @transform_5, window_bounds = array<i64: 1, 1, 128>}, {transform_indices = @transform_6, window_bounds = array<i64: 1, 1, 128>}]} {
    %c0 = arith.constant 0 : index
    %c0_0 = arith.constant 0 : index
    %0 = vector.load %arg3[%c0, %c0_0] : memref<1x8xf32, #tpu.memory_space<vmem>>, vector<1x8xf32>
    %1 = vector.shape_cast %0 : vector<1x8xf32> to vector<1x1x1x8xf32>
    %c0_1 = arith.constant 0 : index
    %c0_2 = arith.constant 0 : index
    %2 = vector.load %arg4[%c0_1, %c0_2] : memref<1x8xf32, #tpu.memory_space<vmem>>, vector<1x8xf32>
    %3 = vector.shape_cast %2 : vector<1x8xf32> to vector<1x1x1x8xf32>
    %c0_3 = arith.constant 0 : index
    %c0_4 = arith.constant 0 : index
    %c0_5 = arith.constant 0 : index
    %c0_6 = arith.constant 0 : index
    %4 = vector.load %arg1[%c0_3, %c0_4, %c0_5, %c0_6] : memref<1x16x16x8xf32, #tpu.memory_space<vmem>>, vector<1x16x16x8xf32>
    %5 = vector.broadcast %1 : vector<1x1x1x8xf32> to vector<1x16x16x8xf32>
    %6 = arith.mulf %4, %5 : vector<1x16x16x8xf32>
    %7 = vector.broadcast %3 : vector<1x1x1x8xf32> to vector<1x16x16x8xf32>
    %8 = arith.addf %6, %7 : vector<1x16x16x8xf32>
    %cst = arith.constant 0.000000e+00 : f32
    %9 = vector.broadcast %cst : f32 to vector<1x18x18x8xf32>
    %c0_7 = arith.constant 0 : index
    %c0_8 = arith.constant 0 : index
    %c0_9 = arith.constant 0 : index
    %c0_10 = arith.constant 0 : index
    %10 = vector.load %arg8[%c0_7, %c0_8, %c0_9, %c0_10] : memref<1x18x18x8xf32, #tpu.memory_space<vmem>>, vector<1x18x18x8xf32>
    tpu.vector_store %arg8[%c0_7, %c0_8, %c0_9, %c0_10], %9 {strides = array<i32>} : memref<1x18x18x8xf32, #tpu.memory_space<vmem>>, vector<1x18x18x8xf32>,
    %cst_11 = arith.constant 0.000000e+00 : f32
    %11 = vector.broadcast %cst_11 : f32 to vector<256x128xf32>
    %c0_12 = arith.constant 0 : index
    %c0_13 = arith.constant 0 : index
    %12 = vector.load %arg9[%c0_12, %c0_13] : memref<256x128xf32, #tpu.memory_space<vmem>>, vector<256x128xf32>
    tpu.vector_store %arg9[%c0_12, %c0_13], %11 {strides = array<i32>} : memref<256x128xf32, #tpu.memory_space<vmem>>, vector<256x128xf32>,
    %c0_14 = arith.constant 0 : index
    %c1 = arith.constant 1 : index
    %c1_15 = arith.constant 1 : index
    %c0_16 = arith.constant 0 : index
    %13 = vector.load %arg8[%c0_14, %c1, %c1_15, %c0_16] : memref<1x18x18x8xf32, #tpu.memory_space<vmem>>, vector<1x16x16x8xf32>
    tpu.vector_store %arg8[%c0_14, %c1, %c1_15, %c0_16], %8 {strides = array<i32>} : memref<1x18x18x8xf32, #tpu.memory_space<vmem>>, vector<1x16x16x8xf32>,
    %c0_17 = arith.constant 0 : index
    %c0_18 = arith.constant 0 : index
    %c0_19 = arith.constant 0 : index
    %c0_20 = arith.constant 0 : index
    %14 = vector.load %arg8[%c0_17, %c0_18, %c0_19, %c0_20] : memref<1x18x18x8xf32, #tpu.memory_space<vmem>>, vector<1x18x16x8xf32>
    %15 = vector.extract_strided_slice %14 {offsets = [0, 0, 0, 0], sizes = [1, 16, 16, 8], strides = [1, 1, 1, 1]} : vector<1x18x16x8xf32> to vector<1x16x16x8xf32>
    %16 = vector.shape_cast %15 : vector<1x16x16x8xf32> to vector<256x8xf32>
    %c0_21 = arith.constant 0 : index
    %c0_22 = arith.constant 0 : index
    %17 = vector.load %arg9[%c0_21, %c0_22] : memref<256x128xf32, #tpu.memory_space<vmem>>, vector<256x8xf32>
    tpu.vector_store %arg9[%c0_21, %c0_22], %16 {strides = array<i32>} : memref<256x128xf32, #tpu.memory_space<vmem>>, vector<256x8xf32>,
    %18 = vector.extract_strided_slice %14 {offsets = [0, 1, 0, 0], sizes = [1, 16, 16, 8], strides = [1, 1, 1, 1]} : vector<1x18x16x8xf32> to vector<1x16x16x8xf32>
    %19 = vector.shape_cast %18 : vector<1x16x16x8xf32> to vector<256x8xf32>
    %c0_23 = arith.constant 0 : index
    %c24 = arith.constant 24 : index
    %20 = vector.load %arg9[%c0_23, %c24] : memref<256x128xf32, #tpu.memory_space<vmem>>, vector<256x8xf32>
    tpu.vector_store %arg9[%c0_23, %c24], %19 {strides = array<i32>} : memref<256x128xf32, #tpu.memory_space<vmem>>, vector<256x8xf32>,
    %21 = vector.extract_strided_slice %14 {offsets = [0, 2, 0, 0], sizes = [1, 16, 16, 8], strides = [1, 1, 1, 1]} : vector<1x18x16x8xf32> to vector<1x16x16x8xf32>
    %22 = vector.shape_cast %21 : vector<1x16x16x8xf32> to vector<256x8xf32>
    %c0_24 = arith.constant 0 : index
    %c48 = arith.constant 48 : index
    %23 = vector.load %arg9[%c0_24, %c48] : memref<256x128xf32, #tpu.memory_space<vmem>>, vector<256x8xf32>
    tpu.vector_store %arg9[%c0_24, %c48], %22 {strides = array<i32>} : memref<256x128xf32, #tpu.memory_space<vmem>>, vector<256x8xf32>,
    %c0_25 = arith.constant 0 : index
    %c0_26 = arith.constant 0 : index
    %c1_27 = arith.constant 1 : index
    %c0_28 = arith.constant 0 : index
    %24 = vector.load %arg8[%c0_25, %c0_26, %c1_27, %c0_28] : memref<1x18x18x8xf32, #tpu.memory_space<vmem>>, vector<1x18x16x8xf32>
    %25 = vector.extract_strided_slice %24 {offsets = [0, 0, 0, 0], sizes = [1, 16, 16, 8], strides = [1, 1, 1, 1]} : vector<1x18x16x8xf32> to vector<1x16x16x8xf32>
    %26 = vector.shape_cast %25 : vector<1x16x16x8xf32> to vector<256x8xf32>
    %c0_29 = arith.constant 0 : index
    %c8 = arith.constant 8 : index
    %27 = vector.load %arg9[%c0_29, %c8] : memref<256x128xf32, #tpu.memory_space<vmem>>, vector<256x8xf32>
    tpu.vector_store %arg9[%c0_29, %c8], %26 {strides = array<i32>} : memref<256x128xf32, #tpu.memory_space<vmem>>, vector<256x8xf32>,
    %28 = vector.extract_strided_slice %24 {offsets = [0, 1, 0, 0], sizes = [1, 16, 16, 8], strides = [1, 1, 1, 1]} : vector<1x18x16x8xf32> to vector<1x16x16x8xf32>
    %29 = vector.shape_cast %28 : vector<1x16x16x8xf32> to vector<256x8xf32>
    %c0_30 = arith.constant 0 : index
    %c32 = arith.constant 32 : index
    %30 = vector.load %arg9[%c0_30, %c32] : memref<256x128xf32, #tpu.memory_space<vmem>>, vector<256x8xf32>
    tpu.vector_store %arg9[%c0_30, %c32], %29 {strides = array<i32>} : memref<256x128xf32, #tpu.memory_space<vmem>>, vector<256x8xf32>,
    %31 = vector.extract_strided_slice %24 {offsets = [0, 2, 0, 0], sizes = [1, 16, 16, 8], strides = [1, 1, 1, 1]} : vector<1x18x16x8xf32> to vector<1x16x16x8xf32>
    %32 = vector.shape_cast %31 : vector<1x16x16x8xf32> to vector<256x8xf32>
    %c0_31 = arith.constant 0 : index
    %c56 = arith.constant 56 : index
    %33 = vector.load %arg9[%c0_31, %c56] : memref<256x128xf32, #tpu.memory_space<vmem>>, vector<256x8xf32>
    tpu.vector_store %arg9[%c0_31, %c56], %32 {strides = array<i32>} : memref<256x128xf32, #tpu.memory_space<vmem>>, vector<256x8xf32>,
    %c0_32 = arith.constant 0 : index
    %c0_33 = arith.constant 0 : index
    %c2 = arith.constant 2 : index
    %c0_34 = arith.constant 0 : index
    %34 = vector.load %arg8[%c0_32, %c0_33, %c2, %c0_34] : memref<1x18x18x8xf32, #tpu.memory_space<vmem>>, vector<1x18x16x8xf32>
    %35 = vector.extract_strided_slice %34 {offsets = [0, 0, 0, 0], sizes = [1, 16, 16, 8], strides = [1, 1, 1, 1]} : vector<1x18x16x8xf32> to vector<1x16x16x8xf32>
    %36 = vector.shape_cast %35 : vector<1x16x16x8xf32> to vector<256x8xf32>
    %c0_35 = arith.constant 0 : index
    %c16 = arith.constant 16 : index
    %37 = vector.load %arg9[%c0_35, %c16] : memref<256x128xf32, #tpu.memory_space<vmem>>, vector<256x8xf32>
    tpu.vector_store %arg9[%c0_35, %c16], %36 {strides = array<i32>} : memref<256x128xf32, #tpu.memory_space<vmem>>, vector<256x8xf32>,
    %38 = vector.extract_strided_slice %34 {offsets = [0, 1, 0, 0], sizes = [1, 16, 16, 8], strides = [1, 1, 1, 1]} : vector<1x18x16x8xf32> to vector<1x16x16x8xf32>
    %39 = vector.shape_cast %38 : vector<1x16x16x8xf32> to vector<256x8xf32>
    %c0_36 = arith.constant 0 : index
    %c40 = arith.constant 40 : index
    %40 = vector.load %arg9[%c0_36, %c40] : memref<256x128xf32, #tpu.memory_space<vmem>>, vector<256x8xf32>
    tpu.vector_store %arg9[%c0_36, %c40], %39 {strides = array<i32>} : memref<256x128xf32, #tpu.memory_space<vmem>>, vector<256x8xf32>,
    %41 = vector.extract_strided_slice %34 {offsets = [0, 2, 0, 0], sizes = [1, 16, 16, 8], strides = [1, 1, 1, 1]} : vector<1x18x16x8xf32> to vector<1x16x16x8xf32>
    %42 = vector.shape_cast %41 : vector<1x16x16x8xf32> to vector<256x8xf32>
    %c0_37 = arith.constant 0 : index
    %c64 = arith.constant 64 : index
    %43 = vector.load %arg9[%c0_37, %c64] : memref<256x128xf32, #tpu.memory_space<vmem>>, vector<256x8xf32>
    tpu.vector_store %arg9[%c0_37, %c64], %42 {strides = array<i32>} : memref<256x128xf32, #tpu.memory_space<vmem>>, vector<256x8xf32>,
    %c0_38 = arith.constant 0 : index
    %c0_39 = arith.constant 0 : index
    %44 = vector.load %arg9[%c0_38, %c0_39] : memref<256x128xf32, #tpu.memory_space<vmem>>, vector<256x128xf32>
    %45 = arith.truncf %44 : vector<256x128xf32> to vector<256x128xbf16>
    %c0_40 = arith.constant 0 : index
    %c0_41 = arith.constant 0 : index
    %46 = vector.load %arg2[%c0_40, %c0_41] : memref<128x128xbf16, #tpu.memory_space<vmem>>, vector<128x128xbf16>
    %cst_42 = arith.constant dense<0.000000e+00> : vector<256x128xf32>
    %47 = tpu.matmul %45, %46, %cst_42 {dimension_numbers = #tpu.dot_dimension_numbers<[1], [0], [0], [1], [0, 0, 1, 1], [], []>} : vector<256x128xbf16>, vector<128x128xbf16>, vector<256x128xf32> -> vector<256x128xf32>
    %cst_43 = arith.constant dense<0.000000e+00> : vector<128xf32>
    %48 = vector.multi_reduction <add>, %47, %cst_43 [0] : vector<256x128xf32> to vector<128xf32>
    %49 = vector.shape_cast %48 : vector<128xf32> to vector<1x128xf32>
    %cst_44 = arith.constant 3.906250e-03 : f32
    %50 = vector.broadcast %cst_44 : f32 to vector<1x128xf32>
    %51 = arith.mulf %49, %50 : vector<1x128xf32>
    %52 = vector.broadcast %51 : vector<1x128xf32> to vector<256x128xf32>
    %53 = arith.subf %47, %52 : vector<256x128xf32>
    %54 = vector.shape_cast %51 : vector<1x128xf32> to vector<1x1x128xf32>
    %c0_45 = arith.constant 0 : index
    %c0_46 = arith.constant 0 : index
    %c0_47 = arith.constant 0 : index
    %55 = vector.load %arg6[%c0_45, %c0_46, %c0_47] : memref<1x1x128xf32, #tpu.memory_space<vmem>>, vector<1x1x128xf32>
    tpu.vector_store %arg6[%c0_45, %c0_46, %c0_47], %54 {strides = array<i32>} : memref<1x1x128xf32, #tpu.memory_space<vmem>>, vector<1x1x128xf32>,
    %56 = arith.mulf %53, %53 : vector<256x128xf32>
    %cst_48 = arith.constant dense<0.000000e+00> : vector<128xf32>
    %57 = vector.multi_reduction <add>, %56, %cst_48 [0] : vector<256x128xf32> to vector<128xf32>
    %58 = vector.shape_cast %57 : vector<128xf32> to vector<1x128xf32>
    %59 = vector.shape_cast %58 : vector<1x128xf32> to vector<1x1x128xf32>
    %c0_49 = arith.constant 0 : index
    %c0_50 = arith.constant 0 : index
    %c0_51 = arith.constant 0 : index
    %60 = vector.load %arg7[%c0_49, %c0_50, %c0_51] : memref<1x1x128xf32, #tpu.memory_space<vmem>>, vector<1x1x128xf32>
    tpu.vector_store %arg7[%c0_49, %c0_50, %c0_51], %59 {strides = array<i32>} : memref<1x1x128xf32, #tpu.memory_space<vmem>>, vector<1x1x128xf32>,
    %61 = vector.extract_strided_slice %47 {offsets = [0, 0], sizes = [256, 8], strides = [1, 1]} : vector<256x128xf32> to vector<256x8xf32>
    %62 = vector.shape_cast %61 : vector<256x8xf32> to vector<1x16x16x8xf32>
    %c0_52 = arith.constant 0 : index
    %c0_53 = arith.constant 0 : index
    %c0_54 = arith.constant 0 : index
    %c0_55 = arith.constant 0 : index
    %63 = vector.load %arg5[%c0_52, %c0_53, %c0_54, %c0_55] : memref<1x16x16x8xf32, #tpu.memory_space<vmem>>, vector<1x16x16x8xf32>
    tpu.vector_store %arg5[%c0_52, %c0_53, %c0_54, %c0_55], %62 {strides = array<i32>} : memref<1x16x16x8xf32, #tpu.memory_space<vmem>>, vector<1x16x16x8xf32>,
    return
  }
  func.func @transform_0(%arg0: i32) -> (i32, i32, i32, i32) {
    %c0_i32 = arith.constant 0 : i32
    %c0_i32_0 = arith.constant 0 : i32
    %c0_i32_1 = arith.constant 0 : i32
    %c0_i32_2 = arith.constant 0 : i32
    return %arg0, %c0_i32, %c0_i32_0, %c0_i32_1 : i32, i32, i32, i32
  }
  func.func @transform_1(%arg0: i32) -> (i32, i32) {
    %c0_i32 = arith.constant 0 : i32
    %c0_i32_0 = arith.constant 0 : i32
    %c0_i32_1 = arith.constant 0 : i32
    return %c0_i32, %c0_i32_0 : i32, i32
  }
  func.func @transform_2(%arg0: i32) -> (i32, i32) {
    %c0_i32 = arith.constant 0 : i32
    %c0_i32_0 = arith.constant 0 : i32
    %c0_i32_1 = arith.constant 0 : i32
    return %c0_i32, %c0_i32_0 : i32, i32
  }
  func.func @transform_3(%arg0: i32) -> (i32, i32) {
    %c0_i32 = arith.constant 0 : i32
    %c0_i32_0 = arith.constant 0 : i32
    %c0_i32_1 = arith.constant 0 : i32
    return %c0_i32, %c0_i32_0 : i32, i32
  }
  func.func @transform_4(%arg0: i32) -> (i32, i32, i32, i32) {
    %c0_i32 = arith.constant 0 : i32
    %c0_i32_0 = arith.constant 0 : i32
    %c0_i32_1 = arith.constant 0 : i32
    %c0_i32_2 = arith.constant 0 : i32
    return %arg0, %c0_i32, %c0_i32_0, %c0_i32_1 : i32, i32, i32, i32
  }
  func.func @transform_5(%arg0: i32) -> (i32, i32, i32) {
    %c0_i32 = arith.constant 0 : i32
    %c0_i32_0 = arith.constant 0 : i32
    %c0_i32_1 = arith.constant 0 : i32
    return %arg0, %c0_i32, %c0_i32_0 : i32, i32, i32
  }
  func.func @transform_6(%arg0: i32) -> (i32, i32, i32) {
    %c0_i32 = arith.constant 0 : i32
    %c0_i32_0 = arith.constant 0 : i32
    %c0_i32_1 = arith.constant 0 : i32
    return %arg0, %c0_i32, %c0_i32_0 : i32, i32, i32
  }
}

</mosaic_0001>

<llo_original>
// kernel: tpu_custom_call.1
$region0: #{tpu_custom_call.1}
  #allocation0 [shape = 'u32[]', space=smem, size = 0x4, offset = 0x4, fixed_abs, tag = 'smem constant byte address 0x4 - core index']
  #allocation1 [shape = 'u32[72,128]{1,0:T(1,128)}', space=vmem, size = 0x9000, scoped, tag = 'internal scratch']
  #allocation2 [shape = 'f32[1,18,18,8]{3,2,1,0:T(8,128)}', space=vmem, size = 0x36000, scoped, tag = 'scratch operand']
  #allocation3 [shape = 'f32[256,128]{1,0:T(8,128)}', space=vmem, size = 0x20000, scoped, tag = 'scratch operand']
  %s0 = inlined_call_operand.vmem [shape: f32[2,16,16,8], index: 0, kind: input, shape index: {}]
  %s1 = inlined_call_operand.vmem [shape: bf16[128,128], index: 1, kind: input, shape index: {}]
  %s2 = inlined_call_operand.vmem [shape: f32[1,8], index: 2, kind: input, shape index: {}]
  %s3 = inlined_call_operand.vmem [shape: f32[1,8], index: 3, kind: input, shape index: {}]
  %s4 = inlined_call_operand.vmem [shape: f32[2,16,16,8], index: 4, kind: output, shape index: {0}]
  %s5 = inlined_call_operand.hbm [shape: f32[2,1,128], index: 5, kind: output, shape index: {1}]
  %s6 = inlined_call_operand.hbm [shape: f32[2,1,128], index: 6, kind: output, shape index: {2}]
  %7 = xla_tuple %s4, %s5, %s6
  %s8 = sld [smem:[#allocation0]]
  $region65: #{tpu_custom_call.1} parent=0
    _
  %s10 = ssub.s32 1, %s8
  %s11 = scalar_select 0, %s10, %s8
  $region1: #{tpu_custom_call.1} parent=0
    #allocation4 [shape = 'u8[1024]{0}', space=vmem, size = 0x400, scoped, tag = 'output window, operand 1']
    #allocation5 [shape = 's32[2]{0}', space=sflag, size = 0x8, scoped, tag = 'scoped memory for tpu_custom_call.1']
    #allocation6 [shape = 'u8[1024]{0}', space=vmem, size = 0x400, scoped, tag = 'output window, operand 2']
    #allocation7 [shape = 's32[2]{0}', space=sflag, size = 0x8, scoped, tag = 'scoped memory for tpu_custom_call.1']
    %12 = vsyncpa [#allocation5], 0
    %s13 = scalar_lea.sflag [#allocation5], 1
    %14 = vsyncpa %s13, 0
    %15 = vsyncpa [#allocation7], 0
    %s16 = scalar_lea.sflag [#allocation7], 1
    %17 = vsyncpa %s16, 0
    loop: start=0, step=1, limit=4
    $region2: #{tpu_custom_call.1} parent=1 // loop_pre_header
      _
    $region3: #{tpu_custom_call.1} parent=1 // loop_header
      %s19 = sphi 0, %s23
      %p20 = scmp.ge.s32.totalorder %s19, 4
      %s29 = sphi 0, %s31
      %s32 = sphi 0, %s29
      %s33 = sphi 0, %s32
      %s49 = sphi 0, %s33
      %s53 = sphi 0, %s53
      %s55 = sphi 0, %s53
      %s56 = sphi 0, %s55
      %s70 = sphi 0, %s56
      %s74 = sphi 0, %s74
      %s76 = sphi 0, %s74
      %s77 = sphi 0, %s76
      %s91 = sphi 0, %s77
      %s95 = sphi 0, %s95
      %s97 = sphi 0, %s95
      %s98 = sphi 0, %s97
      %s112 = sphi 0, %s98
      %s118 = sphi 0, %s120
      %s121 = sphi 0, %s118
      %s122 = sphi 0, %s121
      %s138 = sphi 0, %s122
      %s144 = sphi 0, %s146
      %s147 = sphi 0, %s144
      %s148 = sphi 0, %s147
      %s164 = sphi 0, %s148
      %s170 = sphi 0, %s172
      %s173 = sphi 0, %s170
      %s174 = sphi 0, %s173
      %s190 = sphi 0, %s174
    $region4: #{tpu_custom_call.1} parent=1 // loop_header_branch
      %22 = sbr.rel (%p20) target = $region8
    $region5: #{tpu_custom_call.1} parent=1 // loop_body
      %s24 = ssub.s32 %s19, 1
      %s25 = ssub.s32 %s19, 2
      %s26 = sadd.s32 %s19, 1
      %s27 = ssub.s32 %s19, %s26
      %p28 = scmp.eq.s32.totalorder %s27, 0
      %s30 = sadd.s32 %s29, 1
      %s31 = scalar_select %p28, %s29, %s30
      %p34 = pneg %p28
      %p35 = scmp.eq.s32.totalorder %s19, 1
      %p36 = por %p34, %p35
      %p37 = scmp.ne.s32.totalorder %s29, %s32
      %p38 = scmp.eq.s32.totalorder %s19, 0
      %p39 = por %p37, %p38
      %p40 = scmp.ne.s32.totalorder %s29, %s32
      %p41 = scmp.eq.s32.totalorder %s24, 1
      %p42 = por %p40, %p41
      %p43 = scmp.ne.s32.totalorder %s32, %s33
      %p44 = scmp.eq.s32.totalorder %s24, 0
      %p45 = por %p43, %p44
      %p46 = scmp.ne.s32.totalorder %s32, %s33
      %p47 = scmp.eq.s32.totalorder %s25, 1
      %p48 = por %p46, %p47
      %p50 = scmp.ne.s32.totalorder %s33, %s49
      %p51 = scmp.eq.s32.totalorder %s25, 0
      %p52 = por %p50, %p51
      %s54 = sadd.s32 %s53, 1
      %p57 = scmp.eq.s32.totalorder %s19, 1
      %p58 = scmp.ne.s32.totalorder %s53, %s55
      %p59 = scmp.eq.s32.totalorder %s19, 0
      %p60 = por %p58, %p59
      %p61 = scmp.ne.s32.totalorder %s53, %s55
      %p62 = scmp.eq.s32.totalorder %s24, 1
      %p63 = por %p61, %p62
      %p64 = scmp.ne.s32.totalorder %s55, %s56
      %p65 = scmp.eq.s32.totalorder %s24, 0
      %p66 = por %p64, %p65
      %p67 = scmp.ne.s32.totalorder %s55, %s56
      %p68 = scmp.eq.s32.totalorder %s25, 1
      %p69 = por %p67, %p68
      %p71 = scmp.ne.s32.totalorder %s56, %s70
      %p72 = scmp.eq.s32.totalorder %s25, 0
      %p73 = por %p71, %p72
      %s75 = sadd.s32 %s74, 1
      %p78 = scmp.eq.s32.totalorder %s19, 1
      %p79 = scmp.ne.s32.totalorder %s74, %s76
      %p80 = scmp.eq.s32.totalorder %s19, 0
      %p81 = por %p79, %p80
      %p82 = scmp.ne.s32.totalorder %s74, %s76
      %p83 = scmp.eq.s32.totalorder %s24, 1
      %p84 = por %p82, %p83
      %p85 = scmp.ne.s32.totalorder %s76, %s77
      %p86 = scmp.eq.s32.totalorder %s24, 0
      %p87 = por %p85, %p86
      %p88 = scmp.ne.s32.totalorder %s76, %s77
      %p89 = scmp.eq.s32.totalorder %s25, 1
      %p90 = por %p88, %p89
      %p92 = scmp.ne.s32.totalorder %s77, %s91
      %p93 = scmp.eq.s32.totalorder %s25, 0
      %p94 = por %p92, %p93
      %s96 = sadd.s32 %s95, 1
      %p99 = scmp.eq.s32.totalorder %s19, 1
      %p100 = scmp.ne.s32.totalorder %s95, %s97
      %p101 = scmp.eq.s32.totalorder %s19, 0
      %p102 = por %p100, %p101
      %p103 = scmp.ne.s32.totalorder %s95, %s97
      %p104 = scmp.eq.s32.totalorder %s24, 1
      %p105 = por %p103, %p104
      %p106 = scmp.ne.s32.totalorder %s97, %s98
      %p107 = scmp.eq.s32.totalorder %s24, 0
      %p108 = por %p106, %p107
      %p109 = scmp.ne.s32.totalorder %s97, %s98
      %p110 = scmp.eq.s32.totalorder %s25, 1
      %p111 = por %p109, %p110
      %p113 = scmp.ne.s32.totalorder %s98, %s112
      %p114 = scmp.eq.s32.totalorder %s25, 0
      %p115 = por %p113, %p114
      %s116 = ssub.s32 %s19, %s26
      %p117 = scmp.eq.s32.totalorder %s116, 0
      %s119 = sadd.s32 %s118, 1
      %s120 = scalar_select %p117, %s118, %s119
      %p123 = pneg %p117
      %p124 = scmp.eq.s32.totalorder %s19, 1
      %p125 = por %p123, %p124
      %p126 = scmp.ne.s32.totalorder %s118, %s121
      %p127 = scmp.eq.s32.totalorder %s19, 0
      %p128 = por %p126, %p127
      %p129 = scmp.ne.s32.totalorder %s118, %s121
      %p130 = scmp.eq.s32.totalorder %s24, 1
      %p131 = por %p129, %p130
      %p132 = scmp.ne.s32.totalorder %s121, %s122
      %p133 = scmp.eq.s32.totalorder %s24, 0
      %p134 = por %p132, %p133
      %p135 = scmp.ne.s32.totalorder %s121, %s122
      %p136 = scmp.eq.s32.totalorder %s25, 1
      %p137 = por %p135, %p136
      %p139 = scmp.ne.s32.totalorder %s122, %s138
      %p140 = scmp.eq.s32.totalorder %s25, 0
      %p141 = por %p139, %p140
      %s142 = ssub.s32 %s19, %s26
      %p143 = scmp.eq.s32.totalorder %s142, 0
      %s145 = sadd.s32 %s144, 1
      %s146 = scalar_select %p143, %s144, %s145
      %p149 = pneg %p143
      %p150 = scmp.eq.s32.totalorder %s19, 1
      %p151 = por %p149, %p150
      %p152 = scmp.ne.s32.totalorder %s144, %s147
      %p153 = scmp.eq.s32.totalorder %s19, 0
      %p154 = por %p152, %p153
      %p155 = scmp.ne.s32.totalorder %s144, %s147
      %p156 = scmp.eq.s32.totalorder %s24, 1
      %p157 = por %p155, %p156
      %p158 = scmp.ne.s32.totalorder %s147, %s148
      %p159 = scmp.eq.s32.totalorder %s24, 0
      %p160 = por %p158, %p159
      %p161 = scmp.ne.s32.totalorder %s147, %s148
      %p162 = scmp.eq.s32.totalorder %s25, 1
      %p163 = por %p161, %p162
      %p165 = scmp.ne.s32.totalorder %s148, %s164
      %p166 = scmp.eq.s32.totalorder %s25, 0
      %p167 = por %p165, %p166
      %s168 = ssub.s32 %s19, %s26
      %p169 = scmp.eq.s32.totalorder %s168, 0
      %s171 = sadd.s32 %s170, 1
      %s172 = scalar_select %p169, %s170, %s171
      %p175 = pneg %p169
      %p176 = scmp.eq.s32.totalorder %s19, 1
      %p177 = por %p175, %p176
      %p178 = scmp.ne.s32.totalorder %s170, %s173
      %p179 = scmp.eq.s32.totalorder %s19, 0
      %p180 = por %p178, %p179
      %p181 = scmp.ne.s32.totalorder %s170, %s173
      %p182 = scmp.eq.s32.totalorder %s24, 1
      %p183 = por %p181, %p182
      %p184 = scmp.ne.s32.totalorder %s173, %s174
      %p185 = scmp.eq.s32.totalorder %s24, 0
      %p186 = por %p184, %p185
      %p187 = scmp.ne.s32.totalorder %s173, %s174
      %p188 = scmp.eq.s32.totalorder %s25, 1
      %p189 = por %p187, %p188
      %p191 = scmp.ne.s32.totalorder %s174, %s190
      %p192 = scmp.eq.s32.totalorder %s25, 0
      %p193 = por %p191, %p192
      %p194 = scmp.le.s32.totalorder 1, %s19
      %p195 = scmp.lt.s32.totalorder %s19, 3
      %p196 = pnand %p194, %p195
      %p197 = pneg %p196
      // Predicated region
      $region9: #{tpu_custom_call.1} parent=5 // pred_check
        _
      $region10: #{tpu_custom_call.1} parent=5 // pred_check_branch
        %199 = sbr.rel (%p196) target = $region12
      $region11: #{tpu_custom_call.1} parent=5 // pred_region
        %s200 = ssub.s32 %s19, 1
        // Predicated region
        $region13: #{tpu_custom_call.1} parent=11 // pred_check
          %p201 = pneg %p66
        $region14: #{tpu_custom_call.1} parent=11 // pred_check_branch
          %203 = sbr.rel (%p201) target = $region16
        $region15: #{tpu_custom_call.1} parent=11 // pred_region
          _
        $region16: #{tpu_custom_call.1} parent=11 // pred_fallthru
          _
        // Predicated region
        $region17: #{tpu_custom_call.1} parent=11 // pred_check
          %p204 = pneg %p87
        $region18: #{tpu_custom_call.1} parent=11 // pred_check_branch
          %206 = sbr.rel (%p204) target = $region20
        $region19: #{tpu_custom_call.1} parent=11 // pred_region
          _
        $region20: #{tpu_custom_call.1} parent=11 // pred_fallthru
          _
        // Predicated region
        $region21: #{tpu_custom_call.1} parent=11 // pred_check
          %p207 = pneg %p108
        $region22: #{tpu_custom_call.1} parent=11 // pred_check_branch
          %209 = sbr.rel (%p207) target = $region24
        $region23: #{tpu_custom_call.1} parent=11 // pred_region
          _
        $region24: #{tpu_custom_call.1} parent=11 // pred_fallthru
          _
      $region12: #{tpu_custom_call.1} parent=5 // pred_fallthru
        _
      %p210 = scmp.lt.s32.totalorder %s19, 2
      // Predicated region
      $region25: #{tpu_custom_call.1} parent=5 // pred_check
        %p211 = pneg %p210
      $region26: #{tpu_custom_call.1} parent=5 // pred_check_branch
        %213 = sbr.rel (%p211) target = $region28
      $region27: #{tpu_custom_call.1} parent=5 // pred_region
        // Predicated region
        $region29: #{tpu_custom_call.1} parent=27 // pred_check
          %p214 = pneg %p39
        $region30: #{tpu_custom_call.1} parent=27 // pred_check_branch
          %216 = sbr.rel (%p214) target = $region32
        $region31: #{tpu_custom_call.1} parent=27 // pred_region
          %p217 = scmp.lt.s32.totalorder %s19, 1
          %s218 = scalar_select %p217, %s19, 1
          %s219 = smul.addr %s218, 32
          %s220 = smul.addr %s219, 8
          %s221 = scalar_lea.vmem %s0, %s220
        $region32: #{tpu_custom_call.1} parent=27 // pred_fallthru
          _
      $region28: #{tpu_custom_call.1} parent=5 // pred_fallthru
        _
      %p222 = scmp.le.s32.totalorder 1, %s19
      %p223 = scmp.lt.s32.totalorder %s19, 3
      %p224 = pnand %p222, %p223
      %p225 = pneg %p224
      // Predicated region
      $region33: #{tpu_custom_call.1} parent=5 // pred_check
        _
      $region34: #{tpu_custom_call.1} parent=5 // pred_check_branch
        %227 = sbr.rel (%p224) target = $region36
      $region35: #{tpu_custom_call.1} parent=5 // pred_region
        %s228 = ssub.s32 %s19, 1
        %p229 = scmp.lt.s32.totalorder %s24, 1
        %s230 = scalar_select %p229, %s24, 1
        %s231 = smul.addr %s230, 32
        %s232 = smul.addr %s231, 8
        %s233 = scalar_lea.vmem %s0, %s232
        %p234 = pneg %p45
        %p235 = pneg %p42
        %p236 = pneg %p66
        %p237 = pneg %p63
        %p238 = pneg %p87
        %p239 = pneg %p84
        %p240 = pneg %p108
        %p241 = pneg %p105
        %p242 = pneg %p134
        %p243 = pneg %p131
        %p244 = scmp.lt.s32.totalorder %s24, 1
        %s245 = scalar_select %p244, %s24, 1
        %s246 = smul.addr %s245, 32
        %s247 = smul.addr %s246, 8
        %s248 = scalar_lea.vmem %s4, %s247
        %p249 = pneg %p160
        %p250 = pneg %p157
        %s251 = sand.u32 %s147, 1
        %s252 = scalar_lea.sflag [#allocation5], %s251
        %s253 = sand.u32 %s147, 1
        %s254 = scalar_lea.vmem [#allocation4], %s253
        %p255 = pneg %p186
        %p256 = pneg %p183
        %s257 = sand.u32 %s173, 1
        %s258 = scalar_lea.sflag [#allocation7], %s257
        %s259 = sand.u32 %s173, 1
        %s260 = scalar_lea.vmem [#allocation6], %s259
        %p261 = scmp.lt.s32.totalorder %s24, 1
        %s262 = scalar_select %p261, %s24, 1
        %s263 = smul.addr %s262, 32
        %s264 = smul.addr %s263, 8
        %s265 = scalar_lea.vmem %s0, %s264
        %p266 = scmp.lt.s32.totalorder %s24, 1
        %s267 = scalar_select %p266, %s24, 1
        %s268 = smul.addr %s267, 32
        %s269 = smul.addr %s268, 8
        %s270 = scalar_lea.vmem %s4, %s269
        %v271 = vld [vmem:[%s2] sm:$0x1]
        %v272 = vld [vmem:[%s3] sm:$0x1]
        %v273 = vld [vmem:[%s265] sm:$0xff]
        %v274 = vld [vmem:[%s265 + $0x8] sm:$0xff]
        %v275 = vld [vmem:[%s265 + $0x10] sm:$0xff]
        %v276 = vld [vmem:[%s265 + $0x18] sm:$0xff]
        %v277 = vld [vmem:[%s265 + $0x20] sm:$0xff]
        %v278 = vld [vmem:[%s265 + $0x28] sm:$0xff]
        %v279 = vld [vmem:[%s265 + $0x30] sm:$0xff]
        %v280 = vld [vmem:[%s265 + $0x38] sm:$0xff]
        %v281 = vld [vmem:[%s265 + $0x40] sm:$0xff]
        %v282 = vld [vmem:[%s265 + $0x48] sm:$0xff]
        %v283 = vld [vmem:[%s265 + $0x50] sm:$0xff]
        %v284 = vld [vmem:[%s265 + $0x58] sm:$0xff]
        %v285 = vld [vmem:[%s265 + $0x60] sm:$0xff]
        %v286 = vld [vmem:[%s265 + $0x68] sm:$0xff]
        %v287 = vld [vmem:[%s265 + $0x70] sm:$0xff]
        %v288 = vld [vmem:[%s265 + $0x78] sm:$0xff]
        %v289 = vld [vmem:[%s265 + $0x80] sm:$0xff]
        %v290 = vld [vmem:[%s265 + $0x88] sm:$0xff]
        %v291 = vld [vmem:[%s265 + $0x90] sm:$0xff]
        %v292 = vld [vmem:[%s265 + $0x98] sm:$0xff]
        %v293 = vld [vmem:[%s265 + $0xa0] sm:$0xff]
        %v294 = vld [vmem:[%s265 + $0xa8] sm:$0xff]
        %v295 = vld [vmem:[%s265 + $0xb0] sm:$0xff]
        %v296 = vld [vmem:[%s265 + $0xb8] sm:$0xff]
        %v297 = vld [vmem:[%s265 + $0xc0] sm:$0xff]
        %v298 = vld [vmem:[%s265 + $0xc8] sm:$0xff]
        %v299 = vld [vmem:[%s265 + $0xd0] sm:$0xff]
        %v300 = vld [vmem:[%s265 + $0xd8] sm:$0xff]
        %v301 = vld [vmem:[%s265 + $0xe0] sm:$0xff]
        %v302 = vld [vmem:[%s265 + $0xe8] sm:$0xff]
        %v303 = vld [vmem:[%s265 + $0xf0] sm:$0xff]
        %v304 = vld [vmem:[%s265 + $0xf8] sm:$0xff]
        %v306 = vperm.slane %v271, 0
        %v308 = vmul.f32 %v273, %v306
        %v309 = vmul.f32 %v274, %v306
        %v310 = vmul.f32 %v275, %v306
        %v311 = vmul.f32 %v276, %v306
        %v312 = vmul.f32 %v277, %v306
        %v313 = vmul.f32 %v278, %v306
        %v314 = vmul.f32 %v279, %v306
        %v315 = vmul.f32 %v280, %v306
        %v316 = vmul.f32 %v281, %v306
        %v317 = vmul.f32 %v282, %v306
        %v318 = vmul.f32 %v283, %v306
        %v319 = vmul.f32 %v284, %v306
        %v320 = vmul.f32 %v285, %v306
        %v321 = vmul.f32 %v286, %v306
        %v322 = vmul.f32 %v287, %v306
        %v323 = vmul.f32 %v288, %v306
        %v324 = vmul.f32 %v289, %v306
        %v325 = vmul.f32 %v290, %v306
        %v326 = vmul.f32 %v291, %v306
        %v327 = vmul.f32 %v292, %v306
        %v328 = vmul.f32 %v293, %v306
        %v329 = vmul.f32 %v294, %v306
        %v330 = vmul.f32 %v295, %v306
        %v331 = vmul.f32 %v296, %v306
        %v332 = vmul.f32 %v297, %v306
        %v333 = vmul.f32 %v298, %v306
        %v334 = vmul.f32 %v299, %v306
        %v335 = vmul.f32 %v300, %v306
        %v336 = vmul.f32 %v301, %v306
        %v337 = vmul.f32 %v302, %v306
        %v338 = vmul.f32 %v303, %v306
        %v339 = vmul.f32 %v304, %v306
        %v341 = vperm.slane %v272, 0
        %v343 = vadd.f32 %v308, %v341
        %v344 = vadd.f32 %v309, %v341
        %v345 = vadd.f32 %v310, %v341
        %v346 = vadd.f32 %v311, %v341
        %v347 = vadd.f32 %v312, %v341
        %v348 = vadd.f32 %v313, %v341
        %v349 = vadd.f32 %v314, %v341
        %v350 = vadd.f32 %v315, %v341
        %v351 = vadd.f32 %v316, %v341
        %v352 = vadd.f32 %v317, %v341
        %v353 = vadd.f32 %v318, %v341
        %v354 = vadd.f32 %v319, %v341
        %v355 = vadd.f32 %v320, %v341
        %v356 = vadd.f32 %v321, %v341
        %v357 = vadd.f32 %v322, %v341
        %v358 = vadd.f32 %v323, %v341
        %v359 = vadd.f32 %v324, %v341
        %v360 = vadd.f32 %v325, %v341
        %v361 = vadd.f32 %v326, %v341
        %v362 = vadd.f32 %v327, %v341
        %v363 = vadd.f32 %v328, %v341
        %v364 = vadd.f32 %v329, %v341
        %v365 = vadd.f32 %v330, %v341
        %v366 = vadd.f32 %v331, %v341
        %v367 = vadd.f32 %v332, %v341
        %v368 = vadd.f32 %v333, %v341
        %v369 = vadd.f32 %v334, %v341
        %v370 = vadd.f32 %v335, %v341
        %v371 = vadd.f32 %v336, %v341
        %v372 = vadd.f32 %v337, %v341
        %v373 = vadd.f32 %v338, %v341
        %v374 = vadd.f32 %v339, %v341
        %vm375 = vcmask 64512
        %376 = vst.msk [vmem:[#allocation2] sm:$0xff] %vm375, 0.0
        %377 = vst.msk [vmem:[#allocation2 + $0x8] sm:$0xff] %vm375, 0.0
        %vm378 = vcmask 58368
        %379 = vst.msk [vmem:[#allocation2 + $0x10] sm:$0x3] %vm378, 0.0
        %380 = vst.msk [vmem:[#allocation2 + $0x18] sm:$0xff] %vm375, 0.0
        %381 = vst.msk [vmem:[#allocation2 + $0x20] sm:$0xff] %vm375, 0.0
        %382 = vst.msk [vmem:[#allocation2 + $0x28] sm:$0x3] %vm378, 0.0
        %383 = vst.msk [vmem:[#allocation2 + $0x30] sm:$0xff] %vm375, 0.0
        %384 = vst.msk [vmem:[#allocation2 + $0x38] sm:$0xff] %vm375, 0.0
        %385 = vst.msk [vmem:[#allocation2 + $0x40] sm:$0x3] %vm378, 0.0
        %386 = vst.msk [vmem:[#allocation2 + $0x48] sm:$0xff] %vm375, 0.0
        %387 = vst.msk [vmem:[#allocation2 + $0x50] sm:$0xff] %vm375, 0.0
        %388 = vst.msk [vmem:[#allocation2 + $0x58] sm:$0x3] %vm378, 0.0
        %389 = vst.msk [vmem:[#allocation2 + $0x60] sm:$0xff] %vm375, 0.0
        %390 = vst.msk [vmem:[#allocation2 + $0x68] sm:$0xff] %vm375, 0.0
        %391 = vst.msk [vmem:[#allocation2 + $0x70] sm:$0x3] %vm378, 0.0
        %392 = vst.msk [vmem:[#allocation2 + $0x78] sm:$0xff] %vm375, 0.0
        %393 = vst.msk [vmem:[#allocation2 + $0x80] sm:$0xff] %vm375, 0.0
        %394 = vst.msk [vmem:[#allocation2 + $0x88] sm:$0x3] %vm378, 0.0
        %395 = vst.msk [vmem:[#allocation2 + $0x90] sm:$0xff] %vm375, 0.0
        %396 = vst.msk [vmem:[#allocation2 + $0x98] sm:$0xff] %vm375, 0.0
        %397 = vst.msk [vmem:[#allocation2 + $0xa0] sm:$0x3] %vm378, 0.0
        %398 = vst.msk [vmem:[#allocation2 + $0xa8] sm:$0xff] %vm375, 0.0
        %399 = vst.msk [vmem:[#allocation2 + $0xb0] sm:$0xff] %vm375, 0.0
        %400 = vst.msk [vmem:[#allocation2 + $0xb8] sm:$0x3] %vm378, 0.0
        %401 = vst.msk [vmem:[#allocation2 + $0xc0] sm:$0xff] %vm375, 0.0
        %402 = vst.msk [vmem:[#allocation2 + $0xc8] sm:$0xff] %vm375, 0.0
        %403 = vst.msk [vmem:[#allocation2 + $0xd0] sm:$0x3] %vm378, 0.0
        %404 = vst.msk [vmem:[#allocation2 + $0xd8] sm:$0xff] %vm375, 0.0
        %405 = vst.msk [vmem:[#allocation2 + $0xe0] sm:$0xff] %vm375, 0.0
        %406 = vst.msk [vmem:[#allocation2 + $0xe8] sm:$0x3] %vm378, 0.0
        %407 = vst.msk [vmem:[#allocation2 + $0xf0] sm:$0xff] %vm375, 0.0
        %408 = vst.msk [vmem:[#allocation2 + $0xf8] sm:$0xff] %vm375, 0.0
        %409 = vst.msk [vmem:[#allocation2 + $0x100] sm:$0x3] %vm378, 0.0
        %410 = vst.msk [vmem:[#allocation2 + $0x108] sm:$0xff] %vm375, 0.0
        %411 = vst.msk [vmem:[#allocation2 + $0x110] sm:$0xff] %vm375, 0.0
        %412 = vst.msk [vmem:[#allocation2 + $0x118] sm:$0x3] %vm378, 0.0
        %413 = vst.msk [vmem:[#allocation2 + $0x120] sm:$0xff] %vm375, 0.0
        %414 = vst.msk [vmem:[#allocation2 + $0x128] sm:$0xff] %vm375, 0.0
        %415 = vst.msk [vmem:[#allocation2 + $0x130] sm:$0x3] %vm378, 0.0
        %416 = vst.msk [vmem:[#allocation2 + $0x138] sm:$0xff] %vm375, 0.0
        %417 = vst.msk [vmem:[#allocation2 + $0x140] sm:$0xff] %vm375, 0.0
        %418 = vst.msk [vmem:[#allocation2 + $0x148] sm:$0x3] %vm378, 0.0
        %419 = vst.msk [vmem:[#allocation2 + $0x150] sm:$0xff] %vm375, 0.0
        %420 = vst.msk [vmem:[#allocation2 + $0x158] sm:$0xff] %vm375, 0.0
        %421 = vst.msk [vmem:[#allocation2 + $0x160] sm:$0x3] %vm378, 0.0
        %422 = vst.msk [vmem:[#allocation2 + $0x168] sm:$0xff] %vm375, 0.0
        %423 = vst.msk [vmem:[#allocation2 + $0x170] sm:$0xff] %vm375, 0.0
        %424 = vst.msk [vmem:[#allocation2 + $0x178] sm:$0x3] %vm378, 0.0
        %425 = vst.msk [vmem:[#allocation2 + $0x180] sm:$0xff] %vm375, 0.0
        %426 = vst.msk [vmem:[#allocation2 + $0x188] sm:$0xff] %vm375, 0.0
        %427 = vst.msk [vmem:[#allocation2 + $0x190] sm:$0x3] %vm378, 0.0
        %428 = vst.msk [vmem:[#allocation2 + $0x198] sm:$0xff] %vm375, 0.0
        %429 = vst.msk [vmem:[#allocation2 + $0x1a0] sm:$0xff] %vm375, 0.0
        %430 = vst.msk [vmem:[#allocation2 + $0x1a8] sm:$0x3] %vm378, 0.0
        %431 = vst [vmem:[#allocation3] sm:$0xff] 0.0
        %432 = vst [vmem:[#allocation3 + $0x8] sm:$0xff] 0.0
        %433 = vst [vmem:[#allocation3 + $0x10] sm:$0xff] 0.0
        %434 = vst [vmem:[#allocation3 + $0x18] sm:$0xff] 0.0
        %435 = vst [vmem:[#allocation3 + $0x20] sm:$0xff] 0.0
        %436 = vst [vmem:[#allocation3 + $0x28] sm:$0xff] 0.0
        %437 = vst [vmem:[#allocation3 + $0x30] sm:$0xff] 0.0
        %438 = vst [vmem:[#allocation3 + $0x38] sm:$0xff] 0.0
        %439 = vst [vmem:[#allocation3 + $0x40] sm:$0xff] 0.0
        %440 = vst [vmem:[#allocation3 + $0x48] sm:$0xff] 0.0
        %441 = vst [vmem:[#allocation3 + $0x50] sm:$0xff] 0.0
        %442 = vst [vmem:[#allocation3 + $0x58] sm:$0xff] 0.0
        %443 = vst [vmem:[#allocation3 + $0x60] sm:$0xff] 0.0
        %444 = vst [vmem:[#allocation3 + $0x68] sm:$0xff] 0.0
        %445 = vst [vmem:[#allocation3 + $0x70] sm:$0xff] 0.0
        %446 = vst [vmem:[#allocation3 + $0x78] sm:$0xff] 0.0
        %447 = vst [vmem:[#allocation3 + $0x80] sm:$0xff] 0.0
        %448 = vst [vmem:[#allocation3 + $0x88] sm:$0xff] 0.0
        %449 = vst [vmem:[#allocation3 + $0x90] sm:$0xff] 0.0
        %450 = vst [vmem:[#allocation3 + $0x98] sm:$0xff] 0.0
        %451 = vst [vmem:[#allocation3 + $0xa0] sm:$0xff] 0.0
        %452 = vst [vmem:[#allocation3 + $0xa8] sm:$0xff] 0.0
        %453 = vst [vmem:[#allocation3 + $0xb0] sm:$0xff] 0.0
        %454 = vst [vmem:[#allocation3 + $0xb8] sm:$0xff] 0.0
        %455 = vst [vmem:[#allocation3 + $0xc0] sm:$0xff] 0.0
        %456 = vst [vmem:[#allocation3 + $0xc8] sm:$0xff] 0.0
        %457 = vst [vmem:[#allocation3 + $0xd0] sm:$0xff] 0.0
        %458 = vst [vmem:[#allocation3 + $0xd8] sm:$0xff] 0.0
        %459 = vst [vmem:[#allocation3 + $0xe0] sm:$0xff] 0.0
        %460 = vst [vmem:[#allocation3 + $0xe8] sm:$0xff] 0.0
        %461 = vst [vmem:[#allocation3 + $0xf0] sm:$0xff] 0.0
        %462 = vst [vmem:[#allocation3 + $0xf8] sm:$0xff] 0.0
        %s463 = scalar_lea.vmem [#allocation2], 24
        %464 = vst.msk [vmem:[%s463 + $0x1] sm:$0xff] %vm375, %v343
        %465 = vst.msk [vmem:[%s463 + $0x9] sm:$0xff] %vm375, %v344
        %466 = vst.msk [vmem:[%s463 + $0x19] sm:$0xff] %vm375, %v345
        %467 = vst.msk [vmem:[%s463 + $0x21] sm:$0xff] %vm375, %v346
        %468 = vst.msk [vmem:[%s463 + $0x31] sm:$0xff] %vm375, %v347
        %469 = vst.msk [vmem:[%s463 + $0x39] sm:$0xff] %vm375, %v348
        %470 = vst.msk [vmem:[%s463 + $0x49] sm:$0xff] %vm375, %v349
        %471 = vst.msk [vmem:[%s463 + $0x51] sm:$0xff] %vm375, %v350
        %472 = vst.msk [vmem:[%s463 + $0x61] sm:$0xff] %vm375, %v351
        %473 = vst.msk [vmem:[%s463 + $0x69] sm:$0xff] %vm375, %v352
        %474 = vst.msk [vmem:[%s463 + $0x79] sm:$0xff] %vm375, %v353
        %475 = vst.msk [vmem:[%s463 + $0x81] sm:$0xff] %vm375, %v354
        %476 = vst.msk [vmem:[%s463 + $0x91] sm:$0xff] %vm375, %v355
        %477 = vst.msk [vmem:[%s463 + $0x99] sm:$0xff] %vm375, %v356
        %478 = vst.msk [vmem:[%s463 + $0xa9] sm:$0xff] %vm375, %v357
        %479 = vst.msk [vmem:[%s463 + $0xb1] sm:$0xff] %vm375, %v358
        %480 = vst.msk [vmem:[%s463 + $0xc1] sm:$0xff] %vm375, %v359
        %481 = vst.msk [vmem:[%s463 + $0xc9] sm:$0xff] %vm375, %v360
        %482 = vst.msk [vmem:[%s463 + $0xd9] sm:$0xff] %vm375, %v361
        %483 = vst.msk [vmem:[%s463 + $0xe1] sm:$0xff] %vm375, %v362
        %484 = vst.msk [vmem:[%s463 + $0xf1] sm:$0xff] %vm375, %v363
        %485 = vst.msk [vmem:[%s463 + $0xf9] sm:$0xff] %vm375, %v364
        %486 = vst.msk [vmem:[%s463 + $0x109] sm:$0xff] %vm375, %v365
        %487 = vst.msk [vmem:[%s463 + $0x111] sm:$0xff] %vm375, %v366
        %488 = vst.msk [vmem:[%s463 + $0x121] sm:$0xff] %vm375, %v367
        %489 = vst.msk [vmem:[%s463 + $0x129] sm:$0xff] %vm375, %v368
        %490 = vst.msk [vmem:[%s463 + $0x139] sm:$0xff] %vm375, %v369
        %491 = vst.msk [vmem:[%s463 + $0x141] sm:$0xff] %vm375, %v370
        %492 = vst.msk [vmem:[%s463 + $0x151] sm:$0xff] %vm375, %v371
        %493 = vst.msk [vmem:[%s463 + $0x159] sm:$0xff] %vm375, %v372
        %494 = vst.msk [vmem:[%s463 + $0x169] sm:$0xff] %vm375, %v373
        %495 = vst.msk [vmem:[%s463 + $0x171] sm:$0xff] %vm375, %v374
        %v496 = vld [vmem:[#allocation2] sm:$0xff]
        %v497 = vld [vmem:[#allocation2 + $0x8] sm:$0xff]
        %v498 = vld [vmem:[#allocation2 + $0x18] sm:$0xff]
        %v499 = vld [vmem:[#allocation2 + $0x20] sm:$0xff]
        %v500 = vld [vmem:[#allocation2 + $0x30] sm:$0xff]
        %v501 = vld [vmem:[#allocation2 + $0x38] sm:$0xff]
        %v502 = vld [vmem:[#allocation2 + $0x48] sm:$0xff]
        %v503 = vld [vmem:[#allocation2 + $0x50] sm:$0xff]
        %v504 = vld [vmem:[#allocation2 + $0x60] sm:$0xff]
        %v505 = vld [vmem:[#allocation2 + $0x68] sm:$0xff]
        %v506 = vld [vmem:[#allocation2 + $0x78] sm:$0xff]
        %v507 = vld [vmem:[#allocation2 + $0x80] sm:$0xff]
        %v508 = vld [vmem:[#allocation2 + $0x90] sm:$0xff]
        %v509 = vld [vmem:[#allocation2 + $0x98] sm:$0xff]
        %v510 = vld [vmem:[#allocation2 + $0xa8] sm:$0xff]
        %v511 = vld [vmem:[#allocation2 + $0xb0] sm:$0xff]
        %v512 = vld [vmem:[#allocation2 + $0xc0] sm:$0xff]
        %v513 = vld [vmem:[#allocation2 + $0xc8] sm:$0xff]
        %v514 = vld [vmem:[#allocation2 + $0xd8] sm:$0xff]
        %v515 = vld [vmem:[#allocation2 + $0xe0] sm:$0xff]
        %v516 = vld [vmem:[#allocation2 + $0xf0] sm:$0xff]
        %v517 = vld [vmem:[#allocation2 + $0xf8] sm:$0xff]
        %v518 = vld [vmem:[#allocation2 + $0x108] sm:$0xff]
        %v519 = vld [vmem:[#allocation2 + $0x110] sm:$0xff]
        %v520 = vld [vmem:[#allocation2 + $0x120] sm:$0xff]
        %v521 = vld [vmem:[#allocation2 + $0x128] sm:$0xff]
        %v522 = vld [vmem:[#allocation2 + $0x138] sm:$0xff]
        %v523 = vld [vmem:[#allocation2 + $0x140] sm:$0xff]
        %v524 = vld [vmem:[#allocation2 + $0x150] sm:$0xff]
        %v525 = vld [vmem:[#allocation2 + $0x158] sm:$0xff]
        %v526 = vld [vmem:[#allocation2 + $0x168] sm:$0xff]
        %v527 = vld [vmem:[#allocation2 + $0x170] sm:$0xff]
        %v528 = vld [vmem:[#allocation2 + $0x180] sm:$0xff]
        %v529 = vld [vmem:[#allocation2 + $0x188] sm:$0xff]
        %v530 = vld [vmem:[#allocation2 + $0x198] sm:$0xff]
        %v531 = vld [vmem:[#allocation2 + $0x1a0] sm:$0xff]
        %532 = vst.msk [vmem:[#allocation3] sm:$0xff] %vm375, %v496
        %533 = vst.msk [vmem:[#allocation3 + $0x8] sm:$0xff] %vm375, %v497
        %534 = vst.msk [vmem:[#allocation3 + $0x10] sm:$0xff] %vm375, %v498
        %535 = vst.msk [vmem:[#allocation3 + $0x18] sm:$0xff] %vm375, %v499
        %536 = vst.msk [vmem:[#allocation3 + $0x20] sm:$0xff] %vm375, %v500
        %537 = vst.msk [vmem:[#allocation3 + $0x28] sm:$0xff] %vm375, %v501
        %538 = vst.msk [vmem:[#allocation3 + $0x30] sm:$0xff] %vm375, %v502
        %539 = vst.msk [vmem:[#allocation3 + $0x38] sm:$0xff] %vm375, %v503
        %540 = vst.msk [vmem:[#allocation3 + $0x40] sm:$0xff] %vm375, %v504
        %541 = vst.msk [vmem:[#allocation3 + $0x48] sm:$0xff] %vm375, %v505
        %542 = vst.msk [vmem:[#allocation3 + $0x50] sm:$0xff] %vm375, %v506
        %543 = vst.msk [vmem:[#allocation3 + $0x58] sm:$0xff] %vm375, %v507
        %544 = vst.msk [vmem:[#allocation3 + $0x60] sm:$0xff] %vm375, %v508
        %545 = vst.msk [vmem:[#allocation3 + $0x68] sm:$0xff] %vm375, %v509
        %546 = vst.msk [vmem:[#allocation3 + $0x70] sm:$0xff] %vm375, %v510
        %547 = vst.msk [vmem:[#allocation3 + $0x78] sm:$0xff] %vm375, %v511
        %548 = vst.msk [vmem:[#allocation3 + $0x80] sm:$0xff] %vm375, %v512
        %549 = vst.msk [vmem:[#allocation3 + $0x88] sm:$0xff] %vm375, %v513
        %550 = vst.msk [vmem:[#allocation3 + $0x90] sm:$0xff] %vm375, %v514
        %551 = vst.msk [vmem:[#allocation3 + $0x98] sm:$0xff] %vm375, %v515
        %552 = vst.msk [vmem:[#allocation3 + $0xa0] sm:$0xff] %vm375, %v516
        %553 = vst.msk [vmem:[#allocation3 + $0xa8] sm:$0xff] %vm375, %v517
        %554 = vst.msk [vmem:[#allocation3 + $0xb0] sm:$0xff] %vm375, %v518
        %555 = vst.msk [vmem:[#allocation3 + $0xb8] sm:$0xff] %vm375, %v519
        %556 = vst.msk [vmem:[#allocation3 + $0xc0] sm:$0xff] %vm375, %v520
        %557 = vst.msk [vmem:[#allocation3 + $0xc8] sm:$0xff] %vm375, %v521
        %558 = vst.msk [vmem:[#allocation3 + $0xd0] sm:$0xff] %vm375, %v522
        %559 = vst.msk [vmem:[#allocation3 + $0xd8] sm:$0xff] %vm375, %v523
        %560 = vst.msk [vmem:[#allocation3 + $0xe0] sm:$0xff] %vm375, %v524
        %561 = vst.msk [vmem:[#allocation3 + $0xe8] sm:$0xff] %vm375, %v525
        %562 = vst.msk [vmem:[#allocation3 + $0xf0] sm:$0xff] %vm375, %v526
        %563 = vst.msk [vmem:[#allocation3 + $0xf8] sm:$0xff] %vm375, %v527
        %596 = vrot.lane.b32.xlu0 %v498, 24
        %v597 = vpop.permute.xlu0 %596
        %598 = vrot.lane.b32.xlu0 %v499, 24
        %v599 = vpop.permute.xlu0 %598
        %600 = vrot.lane.b32.xlu0 %v500, 24
        %v601 = vpop.permute.xlu0 %600
        %602 = vrot.lane.b32.xlu0 %v501, 24
        %v603 = vpop.permute.xlu0 %602
        %604 = vrot.lane.b32.xlu0 %v502, 24
        %v605 = vpop.permute.xlu0 %604
        %606 = vrot.lane.b32.xlu0 %v503, 24
        %v607 = vpop.permute.xlu0 %606
        %608 = vrot.lane.b32.xlu0 %v504, 24
        %v609 = vpop.permute.xlu0 %608
        %610 = vrot.lane.b32.xlu0 %v505, 24
        %v611 = vpop.permute.xlu0 %610
        %612 = vrot.lane.b32.xlu0 %v506, 24
        %v613 = vpop.permute.xlu0 %612
        %614 = vrot.lane.b32.xlu0 %v507, 24
        %v615 = vpop.permute.xlu0 %614
        %616 = vrot.lane.b32.xlu0 %v508, 24
        %v617 = vpop.permute.xlu0 %616
        %618 = vrot.lane.b32.xlu0 %v509, 24
        %v619 = vpop.permute.xlu0 %618
        %620 = vrot.lane.b32.xlu0 %v510, 24
        %v621 = vpop.permute.xlu0 %620
        %622 = vrot.lane.b32.xlu0 %v511, 24
        %v623 = vpop.permute.xlu0 %622
        %624 = vrot.lane.b32.xlu0 %v512, 24
        %v625 = vpop.permute.xlu0 %624
        %626 = vrot.lane.b32.xlu0 %v513, 24
        %v627 = vpop.permute.xlu0 %626
        %628 = vrot.lane.b32.xlu0 %v514, 24
        %v629 = vpop.permute.xlu0 %628
        %630 = vrot.lane.b32.xlu0 %v515, 24
        %v631 = vpop.permute.xlu0 %630
        %632 = vrot.lane.b32.xlu0 %v516, 24
        %v633 = vpop.permute.xlu0 %632
        %634 = vrot.lane.b32.xlu0 %v517, 24
        %v635 = vpop.permute.xlu0 %634
        %636 = vrot.lane.b32.xlu0 %v518, 24
        %v637 = vpop.permute.xlu0 %636
        %638 = vrot.lane.b32.xlu0 %v519, 24
        %v639 = vpop.permute.xlu0 %638
        %640 = vrot.lane.b32.xlu0 %v520, 24
        %v641 = vpop.permute.xlu0 %640
        %642 = vrot.lane.b32.xlu0 %v521, 24
        %v643 = vpop.permute.xlu0 %642
        %644 = vrot.lane.b32.xlu0 %v522, 24
        %v645 = vpop.permute.xlu0 %644
        %646 = vrot.lane.b32.xlu0 %v523, 24
        %v647 = vpop.permute.xlu0 %646
        %648 = vrot.lane.b32.xlu0 %v524, 24
        %v649 = vpop.permute.xlu0 %648
        %650 = vrot.lane.b32.xlu0 %v525, 24
        %v651 = vpop.permute.xlu0 %650
        %652 = vrot.lane.b32.xlu0 %v526, 24
        %v653 = vpop.permute.xlu0 %652
        %654 = vrot.lane.b32.xlu0 %v527, 24
        %v655 = vpop.permute.xlu0 %654
        %656 = vrot.lane.b32.xlu0 %v528, 24
        %v657 = vpop.permute.xlu0 %656
        %658 = vrot.lane.b32.xlu0 %v529, 24
        %v659 = vpop.permute.xlu0 %658
        %vm692 = vcmask 261312
        %693 = vst.msk [vmem:[#allocation3] sm:$0xff] %vm692, %v597
        %694 = vst.msk [vmem:[#allocation3 + $0x8] sm:$0xff] %vm692, %v599
        %695 = vst.msk [vmem:[#allocation3 + $0x10] sm:$0xff] %vm692, %v601
        %696 = vst.msk [vmem:[#allocation3 + $0x18] sm:$0xff] %vm692, %v603
        %697 = vst.msk [vmem:[#allocation3 + $0x20] sm:$0xff] %vm692, %v605
        %698 = vst.msk [vmem:[#allocation3 + $0x28] sm:$0xff] %vm692, %v607
        %699 = vst.msk [vmem:[#allocation3 + $0x30] sm:$0xff] %vm692, %v609
        %700 = vst.msk [vmem:[#allocation3 + $0x38] sm:$0xff] %vm692, %v611
        %701 = vst.msk [vmem:[#allocation3 + $0x40] sm:$0xff] %vm692, %v613
        %702 = vst.msk [vmem:[#allocation3 + $0x48] sm:$0xff] %vm692, %v615
        %703 = vst.msk [vmem:[#allocation3 + $0x50] sm:$0xff] %vm692, %v617
        %704 = vst.msk [vmem:[#allocation3 + $0x58] sm:$0xff] %vm692, %v619
        %705 = vst.msk [vmem:[#allocation3 + $0x60] sm:$0xff] %vm692, %v621
        %706 = vst.msk [vmem:[#allocation3 + $0x68] sm:$0xff] %vm692, %v623
        %707 = vst.msk [vmem:[#allocation3 + $0x70] sm:$0xff] %vm692, %v625
        %708 = vst.msk [vmem:[#allocation3 + $0x78] sm:$0xff] %vm692, %v627
        %709 = vst.msk [vmem:[#allocation3 + $0x80] sm:$0xff] %vm692, %v629
        %710 = vst.msk [vmem:[#allocation3 + $0x88] sm:$0xff] %vm692, %v631
        %711 = vst.msk [vmem:[#allocation3 + $0x90] sm:$0xff] %vm692, %v633
        %712 = vst.msk [vmem:[#allocation3 + $0x98] sm:$0xff] %vm692, %v635
        %713 = vst.msk [vmem:[#allocation3 + $0xa0] sm:$0xff] %vm692, %v637
        %714 = vst.msk [vmem:[#allocation3 + $0xa8] sm:$0xff] %vm692, %v639
        %715 = vst.msk [vmem:[#allocation3 + $0xb0] sm:$0xff] %vm692, %v641
        %716 = vst.msk [vmem:[#allocation3 + $0xb8] sm:$0xff] %vm692, %v643
        %717 = vst.msk [vmem:[#allocation3 + $0xc0] sm:$0xff] %vm692, %v645
        %718 = vst.msk [vmem:[#allocation3 + $0xc8] sm:$0xff] %vm692, %v647
        %719 = vst.msk [vmem:[#allocation3 + $0xd0] sm:$0xff] %vm692, %v649
        %720 = vst.msk [vmem:[#allocation3 + $0xd8] sm:$0xff] %vm692, %v651
        %721 = vst.msk [vmem:[#allocation3 + $0xe0] sm:$0xff] %vm692, %v653
        %722 = vst.msk [vmem:[#allocation3 + $0xe8] sm:$0xff] %vm692, %v655
        %723 = vst.msk [vmem:[#allocation3 + $0xf0] sm:$0xff] %vm692, %v657
        %724 = vst.msk [vmem:[#allocation3 + $0xf8] sm:$0xff] %vm692, %v659
        %727 = vrot.lane.b32.xlu0 %v500, 48
        %v728 = vpop.permute.xlu0 %727
        %729 = vrot.lane.b32.xlu0 %v501, 48
        %v730 = vpop.permute.xlu0 %729
        %731 = vrot.lane.b32.xlu0 %v502, 48
        %v732 = vpop.permute.xlu0 %731
        %733 = vrot.lane.b32.xlu0 %v503, 48
        %v734 = vpop.permute.xlu0 %733
        %735 = vrot.lane.b32.xlu0 %v504, 48
        %v736 = vpop.permute.xlu0 %735
        %737 = vrot.lane.b32.xlu0 %v505, 48
        %v738 = vpop.permute.xlu0 %737
        %739 = vrot.lane.b32.xlu0 %v506, 48
        %v740 = vpop.permute.xlu0 %739
        %741 = vrot.lane.b32.xlu0 %v507, 48
        %v742 = vpop.permute.xlu0 %741
        %743 = vrot.lane.b32.xlu0 %v508, 48
        %v744 = vpop.permute.xlu0 %743
        %745 = vrot.lane.b32.xlu0 %v509, 48
        %v746 = vpop.permute.xlu0 %745
        %747 = vrot.lane.b32.xlu0 %v510, 48
        %v748 = vpop.permute.xlu0 %747
        %749 = vrot.lane.b32.xlu0 %v511, 48
        %v750 = vpop.permute.xlu0 %749
        %751 = vrot.lane.b32.xlu0 %v512, 48
        %v752 = vpop.permute.xlu0 %751
        %753 = vrot.lane.b32.xlu0 %v513, 48
        %v754 = vpop.permute.xlu0 %753
        %755 = vrot.lane.b32.xlu0 %v514, 48
        %v756 = vpop.permute.xlu0 %755
        %757 = vrot.lane.b32.xlu0 %v515, 48
        %v758 = vpop.permute.xlu0 %757
        %759 = vrot.lane.b32.xlu0 %v516, 48
        %v760 = vpop.permute.xlu0 %759
        %761 = vrot.lane.b32.xlu0 %v517, 48
        %v762 = vpop.permute.xlu0 %761
        %763 = vrot.lane.b32.xlu0 %v518, 48
        %v764 = vpop.permute.xlu0 %763
        %765 = vrot.lane.b32.xlu0 %v519, 48
        %v766 = vpop.permute.xlu0 %765
        %767 = vrot.lane.b32.xlu0 %v520, 48
        %v768 = vpop.permute.xlu0 %767
        %769 = vrot.lane.b32.xlu0 %v521, 48
        %v770 = vpop.permute.xlu0 %769
        %771 = vrot.lane.b32.xlu0 %v522, 48
        %v772 = vpop.permute.xlu0 %771
        %773 = vrot.lane.b32.xlu0 %v523, 48
        %v774 = vpop.permute.xlu0 %773
        %775 = vrot.lane.b32.xlu0 %v524, 48
        %v776 = vpop.permute.xlu0 %775
        %777 = vrot.lane.b32.xlu0 %v525, 48
        %v778 = vpop.permute.xlu0 %777
        %779 = vrot.lane.b32.xlu0 %v526, 48
        %v780 = vpop.permute.xlu0 %779
        %781 = vrot.lane.b32.xlu0 %v527, 48
        %v782 = vpop.permute.xlu0 %781
        %783 = vrot.lane.b32.xlu0 %v528, 48
        %v784 = vpop.permute.xlu0 %783
        %785 = vrot.lane.b32.xlu0 %v529, 48
        %v786 = vpop.permute.xlu0 %785
        %787 = vrot.lane.b32.xlu0 %v530, 48
        %v788 = vpop.permute.xlu0 %787
        %789 = vrot.lane.b32.xlu0 %v531, 48
        %v790 = vpop.permute.xlu0 %789
        %vm823 = vcmask 458112
        %824 = vst.msk [vmem:[#allocation3] sm:$0xff] %vm823, %v728
        %825 = vst.msk [vmem:[#allocation3 + $0x8] sm:$0xff] %vm823, %v730
        %826 = vst.msk [vmem:[#allocation3 + $0x10] sm:$0xff] %vm823, %v732
        %827 = vst.msk [vmem:[#allocation3 + $0x18] sm:$0xff] %vm823, %v734
        %828 = vst.msk [vmem:[#allocation3 + $0x20] sm:$0xff] %vm823, %v736
        %829 = vst.msk [vmem:[#allocation3 + $0x28] sm:$0xff] %vm823, %v738
        %830 = vst.msk [vmem:[#allocation3 + $0x30] sm:$0xff] %vm823, %v740
        %831 = vst.msk [vmem:[#allocation3 + $0x38] sm:$0xff] %vm823, %v742
        %832 = vst.msk [vmem:[#allocation3 + $0x40] sm:$0xff] %vm823, %v744
        %833 = vst.msk [vmem:[#allocation3 + $0x48] sm:$0xff] %vm823, %v746
        %834 = vst.msk [vmem:[#allocation3 + $0x50] sm:$0xff] %vm823, %v748
        %835 = vst.msk [vmem:[#allocation3 + $0x58] sm:$0xff] %vm823, %v750
        %836 = vst.msk [vmem:[#allocation3 + $0x60] sm:$0xff] %vm823, %v752
        %837 = vst.msk [vmem:[#allocation3 + $0x68] sm:$0xff] %vm823, %v754
        %838 = vst.msk [vmem:[#allocation3 + $0x70] sm:$0xff] %vm823, %v756
        %839 = vst.msk [vmem:[#allocation3 + $0x78] sm:$0xff] %vm823, %v758
        %840 = vst.msk [vmem:[#allocation3 + $0x80] sm:$0xff] %vm823, %v760
        %841 = vst.msk [vmem:[#allocation3 + $0x88] sm:$0xff] %vm823, %v762
        %842 = vst.msk [vmem:[#allocation3 + $0x90] sm:$0xff] %vm823, %v764
        %843 = vst.msk [vmem:[#allocation3 + $0x98] sm:$0xff] %vm823, %v766
        %844 = vst.msk [vmem:[#allocation3 + $0xa0] sm:$0xff] %vm823, %v768
        %845 = vst.msk [vmem:[#allocation3 + $0xa8] sm:$0xff] %vm823, %v770
        %846 = vst.msk [vmem:[#allocation3 + $0xb0] sm:$0xff] %vm823, %v772
        %847 = vst.msk [vmem:[#allocation3 + $0xb8] sm:$0xff] %vm823, %v774
        %848 = vst.msk [vmem:[#allocation3 + $0xc0] sm:$0xff] %vm823, %v776
        %849 = vst.msk [vmem:[#allocation3 + $0xc8] sm:$0xff] %vm823, %v778
        %850 = vst.msk [vmem:[#allocation3 + $0xd0] sm:$0xff] %vm823, %v780
        %851 = vst.msk [vmem:[#allocation3 + $0xd8] sm:$0xff] %vm823, %v782
        %852 = vst.msk [vmem:[#allocation3 + $0xe0] sm:$0xff] %vm823, %v784
        %853 = vst.msk [vmem:[#allocation3 + $0xe8] sm:$0xff] %vm823, %v786
        %854 = vst.msk [vmem:[#allocation3 + $0xf0] sm:$0xff] %vm823, %v788
        %855 = vst.msk [vmem:[#allocation3 + $0xf8] sm:$0xff] %vm823, %v790
        %v856 = vld [vmem:[#allocation2 + $0x1] sm:$0xff]
        %v857 = vld [vmem:[#allocation2 + $0x9] sm:$0xff]
        %v858 = vld [vmem:[#allocation2 + $0x19] sm:$0xff]
        %v859 = vld [vmem:[#allocation2 + $0x21] sm:$0xff]
        %v860 = vld [vmem:[#allocation2 + $0x31] sm:$0xff]
        %v861 = vld [vmem:[#allocation2 + $0x39] sm:$0xff]
        %v862 = vld [vmem:[#allocation2 + $0x49] sm:$0xff]
        %v863 = vld [vmem:[#allocation2 + $0x51] sm:$0xff]
        %v864 = vld [vmem:[#allocation2 + $0x61] sm:$0xff]
        %v865 = vld [vmem:[#allocation2 + $0x69] sm:$0xff]
        %v866 = vld [vmem:[#allocation2 + $0x79] sm:$0xff]
        %v867 = vld [vmem:[#allocation2 + $0x81] sm:$0xff]
        %v868 = vld [vmem:[#allocation2 + $0x91] sm:$0xff]
        %v869 = vld [vmem:[#allocation2 + $0x99] sm:$0xff]
        %v870 = vld [vmem:[#allocation2 + $0xa9] sm:$0xff]
        %v871 = vld [vmem:[#allocation2 + $0xb1] sm:$0xff]
        %v872 = vld [vmem:[#allocation2 + $0xc1] sm:$0xff]
        %v873 = vld [vmem:[#allocation2 + $0xc9] sm:$0xff]
        %v874 = vld [vmem:[#allocation2 + $0xd9] sm:$0xff]
        %v875 = vld [vmem:[#allocation2 + $0xe1] sm:$0xff]
        %v876 = vld [vmem:[#allocation2 + $0xf1] sm:$0xff]
        %v877 = vld [vmem:[#allocation2 + $0xf9] sm:$0xff]
        %v878 = vld [vmem:[#allocation2 + $0x109] sm:$0xff]
        %v879 = vld [vmem:[#allocation2 + $0x111] sm:$0xff]
        %v880 = vld [vmem:[#allocation2 + $0x121] sm:$0xff]
        %v881 = vld [vmem:[#allocation2 + $0x129] sm:$0xff]
        %v882 = vld [vmem:[#allocation2 + $0x139] sm:$0xff]
        %v883 = vld [vmem:[#allocation2 + $0x141] sm:$0xff]
        %v884 = vld [vmem:[#allocation2 + $0x151] sm:$0xff]
        %v885 = vld [vmem:[#allocation2 + $0x159] sm:$0xff]
        %v886 = vld [vmem:[#allocation2 + $0x169] sm:$0xff]
        %v887 = vld [vmem:[#allocation2 + $0x171] sm:$0xff]
        %v888 = vld [vmem:[#allocation2 + $0x181] sm:$0xff]
        %v889 = vld [vmem:[#allocation2 + $0x189] sm:$0xff]
        %v890 = vld [vmem:[#allocation2 + $0x199] sm:$0xff]
        %v891 = vld [vmem:[#allocation2 + $0x1a1] sm:$0xff]
        %924 = vrot.lane.b32.xlu0 %v856, 8
        %v925 = vpop.permute.xlu0 %924
        %926 = vrot.lane.b32.xlu0 %v857, 8
        %v927 = vpop.permute.xlu0 %926
        %928 = vrot.lane.b32.xlu0 %v858, 8
        %v929 = vpop.permute.xlu0 %928
        %930 = vrot.lane.b32.xlu0 %v859, 8
        %v931 = vpop.permute.xlu0 %930
        %932 = vrot.lane.b32.xlu0 %v860, 8
        %v933 = vpop.permute.xlu0 %932
        %934 = vrot.lane.b32.xlu0 %v861, 8
        %v935 = vpop.permute.xlu0 %934
        %936 = vrot.lane.b32.xlu0 %v862, 8
        %v937 = vpop.permute.xlu0 %936
        %938 = vrot.lane.b32.xlu0 %v863, 8
        %v939 = vpop.permute.xlu0 %938
        %940 = vrot.lane.b32.xlu0 %v864, 8
        %v941 = vpop.permute.xlu0 %940
        %942 = vrot.lane.b32.xlu0 %v865, 8
        %v943 = vpop.permute.xlu0 %942
        %944 = vrot.lane.b32.xlu0 %v866, 8
        %v945 = vpop.permute.xlu0 %944
        %946 = vrot.lane.b32.xlu0 %v867, 8
        %v947 = vpop.permute.xlu0 %946
        %948 = vrot.lane.b32.xlu0 %v868, 8
        %v949 = vpop.permute.xlu0 %948
        %950 = vrot.lane.b32.xlu0 %v869, 8
        %v951 = vpop.permute.xlu0 %950
        %952 = vrot.lane.b32.xlu0 %v870, 8
        %v953 = vpop.permute.xlu0 %952
        %954 = vrot.lane.b32.xlu0 %v871, 8
        %v955 = vpop.permute.xlu0 %954
        %956 = vrot.lane.b32.xlu0 %v872, 8
        %v957 = vpop.permute.xlu0 %956
        %958 = vrot.lane.b32.xlu0 %v873, 8
        %v959 = vpop.permute.xlu0 %958
        %960 = vrot.lane.b32.xlu0 %v874, 8
        %v961 = vpop.permute.xlu0 %960
        %962 = vrot.lane.b32.xlu0 %v875, 8
        %v963 = vpop.permute.xlu0 %962
        %964 = vrot.lane.b32.xlu0 %v876, 8
        %v965 = vpop.permute.xlu0 %964
        %966 = vrot.lane.b32.xlu0 %v877, 8
        %v967 = vpop.permute.xlu0 %966
        %968 = vrot.lane.b32.xlu0 %v878, 8
        %v969 = vpop.permute.xlu0 %968
        %970 = vrot.lane.b32.xlu0 %v879, 8
        %v971 = vpop.permute.xlu0 %970
        %972 = vrot.lane.b32.xlu0 %v880, 8
        %v973 = vpop.permute.xlu0 %972
        %974 = vrot.lane.b32.xlu0 %v881, 8
        %v975 = vpop.permute.xlu0 %974
        %976 = vrot.lane.b32.xlu0 %v882, 8
        %v977 = vpop.permute.xlu0 %976
        %978 = vrot.lane.b32.xlu0 %v883, 8
        %v979 = vpop.permute.xlu0 %978
        %980 = vrot.lane.b32.xlu0 %v884, 8
        %v981 = vpop.permute.xlu0 %980
        %982 = vrot.lane.b32.xlu0 %v885, 8
        %v983 = vpop.permute.xlu0 %982
        %984 = vrot.lane.b32.xlu0 %v886, 8
        %v985 = vpop.permute.xlu0 %984
        %986 = vrot.lane.b32.xlu0 %v887, 8
        %v987 = vpop.permute.xlu0 %986
        %vm1020 = vcmask 130112
        %1021 = vst.msk [vmem:[#allocation3] sm:$0xff] %vm1020, %v925
        %1022 = vst.msk [vmem:[#allocation3 + $0x8] sm:$0xff] %vm1020, %v927
        %1023 = vst.msk [vmem:[#allocation3 + $0x10] sm:$0xff] %vm1020, %v929
        %1024 = vst.msk [vmem:[#allocation3 + $0x18] sm:$0xff] %vm1020, %v931
        %1025 = vst.msk [vmem:[#allocation3 + $0x20] sm:$0xff] %vm1020, %v933
        %1026 = vst.msk [vmem:[#allocation3 + $0x28] sm:$0xff] %vm1020, %v935
        %1027 = vst.msk [vmem:[#allocation3 + $0x30] sm:$0xff] %vm1020, %v937
        %1028 = vst.msk [vmem:[#allocation3 + $0x38] sm:$0xff] %vm1020, %v939
        %1029 = vst.msk [vmem:[#allocation3 + $0x40] sm:$0xff] %vm1020, %v941
        %1030 = vst.msk [vmem:[#allocation3 + $0x48] sm:$0xff] %vm1020, %v943
        %1031 = vst.msk [vmem:[#allocation3 + $0x50] sm:$0xff] %vm1020, %v945
        %1032 = vst.msk [vmem:[#allocation3 + $0x58] sm:$0xff] %vm1020, %v947
        %1033 = vst.msk [vmem:[#allocation3 + $0x60] sm:$0xff] %vm1020, %v949
        %1034 = vst.msk [vmem:[#allocation3 + $0x68] sm:$0xff] %vm1020, %v951
        %1035 = vst.msk [vmem:[#allocation3 + $0x70] sm:$0xff] %vm1020, %v953
        %1036 = vst.msk [vmem:[#allocation3 + $0x78] sm:$0xff] %vm1020, %v955
        %1037 = vst.msk [vmem:[#allocation3 + $0x80] sm:$0xff] %vm1020, %v957
        %1038 = vst.msk [vmem:[#allocation3 + $0x88] sm:$0xff] %vm1020, %v959
        %1039 = vst.msk [vmem:[#allocation3 + $0x90] sm:$0xff] %vm1020, %v961
        %1040 = vst.msk [vmem:[#allocation3 + $0x98] sm:$0xff] %vm1020, %v963
        %1041 = vst.msk [vmem:[#allocation3 + $0xa0] sm:$0xff] %vm1020, %v965
        %1042 = vst.msk [vmem:[#allocation3 + $0xa8] sm:$0xff] %vm1020, %v967
        %1043 = vst.msk [vmem:[#allocation3 + $0xb0] sm:$0xff] %vm1020, %v969
        %1044 = vst.msk [vmem:[#allocation3 + $0xb8] sm:$0xff] %vm1020, %v971
        %1045 = vst.msk [vmem:[#allocation3 + $0xc0] sm:$0xff] %vm1020, %v973
        %1046 = vst.msk [vmem:[#allocation3 + $0xc8] sm:$0xff] %vm1020, %v975
        %1047 = vst.msk [vmem:[#allocation3 + $0xd0] sm:$0xff] %vm1020, %v977
        %1048 = vst.msk [vmem:[#allocation3 + $0xd8] sm:$0xff] %vm1020, %v979
        %1049 = vst.msk [vmem:[#allocation3 + $0xe0] sm:$0xff] %vm1020, %v981
        %1050 = vst.msk [vmem:[#allocation3 + $0xe8] sm:$0xff] %vm1020, %v983
        %1051 = vst.msk [vmem:[#allocation3 + $0xf0] sm:$0xff] %vm1020, %v985
        %1052 = vst.msk [vmem:[#allocation3 + $0xf8] sm:$0xff] %vm1020, %v987
        %1055 = vrot.lane.b32.xlu0 %v858, 32
        %v1056 = vpop.permute.xlu0 %1055
        %1057 = vrot.lane.b32.xlu0 %v859, 32
        %v1058 = vpop.permute.xlu0 %1057
        %1059 = vrot.lane.b32.xlu0 %v860, 32
        %v1060 = vpop.permute.xlu0 %1059
        %1061 = vrot.lane.b32.xlu0 %v861, 32
        %v1062 = vpop.permute.xlu0 %1061
        %1063 = vrot.lane.b32.xlu0 %v862, 32
        %v1064 = vpop.permute.xlu0 %1063
        %1065 = vrot.lane.b32.xlu0 %v863, 32
        %v1066 = vpop.permute.xlu0 %1065
        %1067 = vrot.lane.b32.xlu0 %v864, 32
        %v1068 = vpop.permute.xlu0 %1067
        %1069 = vrot.lane.b32.xlu0 %v865, 32
        %v1070 = vpop.permute.xlu0 %1069
        %1071 = vrot.lane.b32.xlu0 %v866, 32
        %v1072 = vpop.permute.xlu0 %1071
        %1073 = vrot.lane.b32.xlu0 %v867, 32
        %v1074 = vpop.permute.xlu0 %1073
        %1075 = vrot.lane.b32.xlu0 %v868, 32
        %v1076 = vpop.permute.xlu0 %1075
        %1077 = vrot.lane.b32.xlu0 %v869, 32
        %v1078 = vpop.permute.xlu0 %1077
        %1079 = vrot.lane.b32.xlu0 %v870, 32
        %v1080 = vpop.permute.xlu0 %1079
        %1081 = vrot.lane.b32.xlu0 %v871, 32
        %v1082 = vpop.permute.xlu0 %1081
        %1083 = vrot.lane.b32.xlu0 %v872, 32
        %v1084 = vpop.permute.xlu0 %1083
        %1085 = vrot.lane.b32.xlu0 %v873, 32
        %v1086 = vpop.permute.xlu0 %1085
        %1087 = vrot.lane.b32.xlu0 %v874, 32
        %v1088 = vpop.permute.xlu0 %1087
        %1089 = vrot.lane.b32.xlu0 %v875, 32
        %v1090 = vpop.permute.xlu0 %1089
        %1091 = vrot.lane.b32.xlu0 %v876, 32
        %v1092 = vpop.permute.xlu0 %1091
        %1093 = vrot.lane.b32.xlu0 %v877, 32
        %v1094 = vpop.permute.xlu0 %1093
        %1095 = vrot.lane.b32.xlu0 %v878, 32
        %v1096 = vpop.permute.xlu0 %1095
        %1097 = vrot.lane.b32.xlu0 %v879, 32
        %v1098 = vpop.permute.xlu0 %1097
        %1099 = vrot.lane.b32.xlu0 %v880, 32
        %v1100 = vpop.permute.xlu0 %1099
        %1101 = vrot.lane.b32.xlu0 %v881, 32
        %v1102 = vpop.permute.xlu0 %1101
        %1103 = vrot.lane.b32.xlu0 %v882, 32
        %v1104 = vpop.permute.xlu0 %1103
        %1105 = vrot.lane.b32.xlu0 %v883, 32
        %v1106 = vpop.permute.xlu0 %1105
        %1107 = vrot.lane.b32.xlu0 %v884, 32
        %v1108 = vpop.permute.xlu0 %1107
        %1109 = vrot.lane.b32.xlu0 %v885, 32
        %v1110 = vpop.permute.xlu0 %1109
        %1111 = vrot.lane.b32.xlu0 %v886, 32
        %v1112 = vpop.permute.xlu0 %1111
        %1113 = vrot.lane.b32.xlu0 %v887, 32
        %v1114 = vpop.permute.xlu0 %1113
        %1115 = vrot.lane.b32.xlu0 %v888, 32
        %v1116 = vpop.permute.xlu0 %1115
        %1117 = vrot.lane.b32.xlu0 %v889, 32
        %v1118 = vpop.permute.xlu0 %1117
        %vm1151 = vcmask 326912
        %1152 = vst.msk [vmem:[#allocation3] sm:$0xff] %vm1151, %v1056
        %1153 = vst.msk [vmem:[#allocation3 + $0x8] sm:$0xff] %vm1151, %v1058
        %1154 = vst.msk [vmem:[#allocation3 + $0x10] sm:$0xff] %vm1151, %v1060
        %1155 = vst.msk [vmem:[#allocation3 + $0x18] sm:$0xff] %vm1151, %v1062
        %1156 = vst.msk [vmem:[#allocation3 + $0x20] sm:$0xff] %vm1151, %v1064
        %1157 = vst.msk [vmem:[#allocation3 + $0x28] sm:$0xff] %vm1151, %v1066
        %1158 = vst.msk [vmem:[#allocation3 + $0x30] sm:$0xff] %vm1151, %v1068
        %1159 = vst.msk [vmem:[#allocation3 + $0x38] sm:$0xff] %vm1151, %v1070
        %1160 = vst.msk [vmem:[#allocation3 + $0x40] sm:$0xff] %vm1151, %v1072
        %1161 = vst.msk [vmem:[#allocation3 + $0x48] sm:$0xff] %vm1151, %v1074
        %1162 = vst.msk [vmem:[#allocation3 + $0x50] sm:$0xff] %vm1151, %v1076
        %1163 = vst.msk [vmem:[#allocation3 + $0x58] sm:$0xff] %vm1151, %v1078
        %1164 = vst.msk [vmem:[#allocation3 + $0x60] sm:$0xff] %vm1151, %v1080
        %1165 = vst.msk [vmem:[#allocation3 + $0x68] sm:$0xff] %vm1151, %v1082
        %1166 = vst.msk [vmem:[#allocation3 + $0x70] sm:$0xff] %vm1151, %v1084
        %1167 = vst.msk [vmem:[#allocation3 + $0x78] sm:$0xff] %vm1151, %v1086
        %1168 = vst.msk [vmem:[#allocation3 + $0x80] sm:$0xff] %vm1151, %v1088
        %1169 = vst.msk [vmem:[#allocation3 + $0x88] sm:$0xff] %vm1151, %v1090
        %1170 = vst.msk [vmem:[#allocation3 + $0x90] sm:$0xff] %vm1151, %v1092
        %1171 = vst.msk [vmem:[#allocation3 + $0x98] sm:$0xff] %vm1151, %v1094
        %1172 = vst.msk [vmem:[#allocation3 + $0xa0] sm:$0xff] %vm1151, %v1096
        %1173 = vst.msk [vmem:[#allocation3 + $0xa8] sm:$0xff] %vm1151, %v1098
        %1174 = vst.msk [vmem:[#allocation3 + $0xb0] sm:$0xff] %vm1151, %v1100
        %1175 = vst.msk [vmem:[#allocation3 + $0xb8] sm:$0xff] %vm1151, %v1102
        %1176 = vst.msk [vmem:[#allocation3 + $0xc0] sm:$0xff] %vm1151, %v1104
        %1177 = vst.msk [vmem:[#allocation3 + $0xc8] sm:$0xff] %vm1151, %v1106
        %1178 = vst.msk [vmem:[#allocation3 + $0xd0] sm:$0xff] %vm1151, %v1108
        %1179 = vst.msk [vmem:[#allocation3 + $0xd8] sm:$0xff] %vm1151, %v1110
        %1180 = vst.msk [vmem:[#allocation3 + $0xe0] sm:$0xff] %vm1151, %v1112
        %1181 = vst.msk [vmem:[#allocation3 + $0xe8] sm:$0xff] %vm1151, %v1114
        %1182 = vst.msk [vmem:[#allocation3 + $0xf0] sm:$0xff] %vm1151, %v1116
        %1183 = vst.msk [vmem:[#allocation3 + $0xf8] sm:$0xff] %vm1151, %v1118
        %1186 = vrot.lane.b32.xlu0 %v860, 56
        %v1187 = vpop.permute.xlu0 %1186
        %1188 = vrot.lane.b32.xlu0 %v861, 56
        %v1189 = vpop.permute.xlu0 %1188
        %1190 = vrot.lane.b32.xlu0 %v862, 56
        %v1191 = vpop.permute.xlu0 %1190
        %1192 = vrot.lane.b32.xlu0 %v863, 56
        %v1193 = vpop.permute.xlu0 %1192
        %1194 = vrot.lane.b32.xlu0 %v864, 56
        %v1195 = vpop.permute.xlu0 %1194
        %1196 = vrot.lane.b32.xlu0 %v865, 56
        %v1197 = vpop.permute.xlu0 %1196
        %1198 = vrot.lane.b32.xlu0 %v866, 56
        %v1199 = vpop.permute.xlu0 %1198
        %1200 = vrot.lane.b32.xlu0 %v867, 56
        %v1201 = vpop.permute.xlu0 %1200
        %1202 = vrot.lane.b32.xlu0 %v868, 56
        %v1203 = vpop.permute.xlu0 %1202
        %1204 = vrot.lane.b32.xlu0 %v869, 56
        %v1205 = vpop.permute.xlu0 %1204
        %1206 = vrot.lane.b32.xlu0 %v870, 56
        %v1207 = vpop.permute.xlu0 %1206
        %1208 = vrot.lane.b32.xlu0 %v871, 56
        %v1209 = vpop.permute.xlu0 %1208
        %1210 = vrot.lane.b32.xlu0 %v872, 56
        %v1211 = vpop.permute.xlu0 %1210
        %1212 = vrot.lane.b32.xlu0 %v873, 56
        %v1213 = vpop.permute.xlu0 %1212
        %1214 = vrot.lane.b32.xlu0 %v874, 56
        %v1215 = vpop.permute.xlu0 %1214
        %1216 = vrot.lane.b32.xlu0 %v875, 56
        %v1217 = vpop.permute.xlu0 %1216
        %1218 = vrot.lane.b32.xlu0 %v876, 56
        %v1219 = vpop.permute.xlu0 %1218
        %1220 = vrot.lane.b32.xlu0 %v877, 56
        %v1221 = vpop.permute.xlu0 %1220
        %1222 = vrot.lane.b32.xlu0 %v878, 56
        %v1223 = vpop.permute.xlu0 %1222
        %1224 = vrot.lane.b32.xlu0 %v879, 56
        %v1225 = vpop.permute.xlu0 %1224
        %1226 = vrot.lane.b32.xlu0 %v880, 56
        %v1227 = vpop.permute.xlu0 %1226
        %1228 = vrot.lane.b32.xlu0 %v881, 56
        %v1229 = vpop.permute.xlu0 %1228
        %1230 = vrot.lane.b32.xlu0 %v882, 56
        %v1231 = vpop.permute.xlu0 %1230
        %1232 = vrot.lane.b32.xlu0 %v883, 56
        %v1233 = vpop.permute.xlu0 %1232
        %1234 = vrot.lane.b32.xlu0 %v884, 56
        %v1235 = vpop.permute.xlu0 %1234
        %1236 = vrot.lane.b32.xlu0 %v885, 56
        %v1237 = vpop.permute.xlu0 %1236
        %1238 = vrot.lane.b32.xlu0 %v886, 56
        %v1239 = vpop.permute.xlu0 %1238
        %1240 = vrot.lane.b32.xlu0 %v887, 56
        %v1241 = vpop.permute.xlu0 %1240
        %1242 = vrot.lane.b32.xlu0 %v888, 56
        %v1243 = vpop.permute.xlu0 %1242
        %1244 = vrot.lane.b32.xlu0 %v889, 56
        %v1245 = vpop.permute.xlu0 %1244
        %1246 = vrot.lane.b32.xlu0 %v890, 56
        %v1247 = vpop.permute.xlu0 %1246
        %1248 = vrot.lane.b32.xlu0 %v891, 56
        %v1249 = vpop.permute.xlu0 %1248
        %vm1282 = vcmask 523712
        %1283 = vst.msk [vmem:[#allocation3] sm:$0xff] %vm1282, %v1187
        %1284 = vst.msk [vmem:[#allocation3 + $0x8] sm:$0xff] %vm1282, %v1189
        %1285 = vst.msk [vmem:[#allocation3 + $0x10] sm:$0xff] %vm1282, %v1191
        %1286 = vst.msk [vmem:[#allocation3 + $0x18] sm:$0xff] %vm1282, %v1193
        %1287 = vst.msk [vmem:[#allocation3 + $0x20] sm:$0xff] %vm1282, %v1195
        %1288 = vst.msk [vmem:[#allocation3 + $0x28] sm:$0xff] %vm1282, %v1197
        %1289 = vst.msk [vmem:[#allocation3 + $0x30] sm:$0xff] %vm1282, %v1199
        %1290 = vst.msk [vmem:[#allocation3 + $0x38] sm:$0xff] %vm1282, %v1201
        %1291 = vst.msk [vmem:[#allocation3 + $0x40] sm:$0xff] %vm1282, %v1203
        %1292 = vst.msk [vmem:[#allocation3 + $0x48] sm:$0xff] %vm1282, %v1205
        %1293 = vst.msk [vmem:[#allocation3 + $0x50] sm:$0xff] %vm1282, %v1207
        %1294 = vst.msk [vmem:[#allocation3 + $0x58] sm:$0xff] %vm1282, %v1209
        %1295 = vst.msk [vmem:[#allocation3 + $0x60] sm:$0xff] %vm1282, %v1211
        %1296 = vst.msk [vmem:[#allocation3 + $0x68] sm:$0xff] %vm1282, %v1213
        %1297 = vst.msk [vmem:[#allocation3 + $0x70] sm:$0xff] %vm1282, %v1215
        %1298 = vst.msk [vmem:[#allocation3 + $0x78] sm:$0xff] %vm1282, %v1217
        %1299 = vst.msk [vmem:[#allocation3 + $0x80] sm:$0xff] %vm1282, %v1219
        %1300 = vst.msk [vmem:[#allocation3 + $0x88] sm:$0xff] %vm1282, %v1221
        %1301 = vst.msk [vmem:[#allocation3 + $0x90] sm:$0xff] %vm1282, %v1223
        %1302 = vst.msk [vmem:[#allocation3 + $0x98] sm:$0xff] %vm1282, %v1225
        %1303 = vst.msk [vmem:[#allocation3 + $0xa0] sm:$0xff] %vm1282, %v1227
        %1304 = vst.msk [vmem:[#allocation3 + $0xa8] sm:$0xff] %vm1282, %v1229
        %1305 = vst.msk [vmem:[#allocation3 + $0xb0] sm:$0xff] %vm1282, %v1231
        %1306 = vst.msk [vmem:[#allocation3 + $0xb8] sm:$0xff] %vm1282, %v1233
        %1307 = vst.msk [vmem:[#allocation3 + $0xc0] sm:$0xff] %vm1282, %v1235
        %1308 = vst.msk [vmem:[#allocation3 + $0xc8] sm:$0xff] %vm1282, %v1237
        %1309 = vst.msk [vmem:[#allocation3 + $0xd0] sm:$0xff] %vm1282, %v1239
        %1310 = vst.msk [vmem:[#allocation3 + $0xd8] sm:$0xff] %vm1282, %v1241
        %1311 = vst.msk [vmem:[#allocation3 + $0xe0] sm:$0xff] %vm1282, %v1243
        %1312 = vst.msk [vmem:[#allocation3 + $0xe8] sm:$0xff] %vm1282, %v1245
        %1313 = vst.msk [vmem:[#allocation3 + $0xf0] sm:$0xff] %vm1282, %v1247
        %1314 = vst.msk [vmem:[#allocation3 + $0xf8] sm:$0xff] %vm1282, %v1249
        %v1315 = vld [vmem:[#allocation2 + $0x2] sm:$0xff]
        %v1316 = vld [vmem:[#allocation2 + $0xa] sm:$0xff]
        %v1317 = vld [vmem:[#allocation2 + $0x1a] sm:$0xff]
        %v1318 = vld [vmem:[#allocation2 + $0x22] sm:$0xff]
        %v1319 = vld [vmem:[#allocation2 + $0x32] sm:$0xff]
        %v1320 = vld [vmem:[#allocation2 + $0x3a] sm:$0xff]
        %v1321 = vld [vmem:[#allocation2 + $0x4a] sm:$0xff]
        %v1322 = vld [vmem:[#allocation2 + $0x52] sm:$0xff]
        %v1323 = vld [vmem:[#allocation2 + $0x62] sm:$0xff]
        %v1324 = vld [vmem:[#allocation2 + $0x6a] sm:$0xff]
        %v1325 = vld [vmem:[#allocation2 + $0x7a] sm:$0xff]
        %v1326 = vld [vmem:[#allocation2 + $0x82] sm:$0xff]
        %v1327 = vld [vmem:[#allocation2 + $0x92] sm:$0xff]
        %v1328 = vld [vmem:[#allocation2 + $0x9a] sm:$0xff]
        %v1329 = vld [vmem:[#allocation2 + $0xaa] sm:$0xff]
        %v1330 = vld [vmem:[#allocation2 + $0xb2] sm:$0xff]
        %v1331 = vld [vmem:[#allocation2 + $0xc2] sm:$0xff]
        %v1332 = vld [vmem:[#allocation2 + $0xca] sm:$0xff]
        %v1333 = vld [vmem:[#allocation2 + $0xda] sm:$0xff]
        %v1334 = vld [vmem:[#allocation2 + $0xe2] sm:$0xff]
        %v1335 = vld [vmem:[#allocation2 + $0xf2] sm:$0xff]
        %v1336 = vld [vmem:[#allocation2 + $0xfa] sm:$0xff]
        %v1337 = vld [vmem:[#allocation2 + $0x10a] sm:$0xff]
        %v1338 = vld [vmem:[#allocation2 + $0x112] sm:$0xff]
        %v1339 = vld [vmem:[#allocation2 + $0x122] sm:$0xff]
        %v1340 = vld [vmem:[#allocation2 + $0x12a] sm:$0xff]
        %v1341 = vld [vmem:[#allocation2 + $0x13a] sm:$0xff]
        %v1342 = vld [vmem:[#allocation2 + $0x142] sm:$0xff]
        %v1343 = vld [vmem:[#allocation2 + $0x152] sm:$0xff]
        %v1344 = vld [vmem:[#allocation2 + $0x15a] sm:$0xff]
        %v1345 = vld [vmem:[#allocation2 + $0x16a] sm:$0xff]
        %v1346 = vld [vmem:[#allocation2 + $0x172] sm:$0xff]
        %v1347 = vld [vmem:[#allocation2 + $0x182] sm:$0xff]
        %v1348 = vld [vmem:[#allocation2 + $0x18a] sm:$0xff]
        %v1349 = vld [vmem:[#allocation2 + $0x19a] sm:$0xff]
        %v1350 = vld [vmem:[#allocation2 + $0x1a2] sm:$0xff]
        %1383 = vrot.lane.b32.xlu0 %v1315, 16
        %v1384 = vpop.permute.xlu0 %1383
        %1385 = vrot.lane.b32.xlu0 %v1316, 16
        %v1386 = vpop.permute.xlu0 %1385
        %1387 = vrot.lane.b32.xlu0 %v1317, 16
        %v1388 = vpop.permute.xlu0 %1387
        %1389 = vrot.lane.b32.xlu0 %v1318, 16
        %v1390 = vpop.permute.xlu0 %1389
        %1391 = vrot.lane.b32.xlu0 %v1319, 16
        %v1392 = vpop.permute.xlu0 %1391
        %1393 = vrot.lane.b32.xlu0 %v1320, 16
        %v1394 = vpop.permute.xlu0 %1393
        %1395 = vrot.lane.b32.xlu0 %v1321, 16
        %v1396 = vpop.permute.xlu0 %1395
        %1397 = vrot.lane.b32.xlu0 %v1322, 16
        %v1398 = vpop.permute.xlu0 %1397
        %1399 = vrot.lane.b32.xlu0 %v1323, 16
        %v1400 = vpop.permute.xlu0 %1399
        %1401 = vrot.lane.b32.xlu0 %v1324, 16
        %v1402 = vpop.permute.xlu0 %1401
        %1403 = vrot.lane.b32.xlu0 %v1325, 16
        %v1404 = vpop.permute.xlu0 %1403
        %1405 = vrot.lane.b32.xlu0 %v1326, 16
        %v1406 = vpop.permute.xlu0 %1405
        %1407 = vrot.lane.b32.xlu0 %v1327, 16
        %v1408 = vpop.permute.xlu0 %1407
        %1409 = vrot.lane.b32.xlu0 %v1328, 16
        %v1410 = vpop.permute.xlu0 %1409
        %1411 = vrot.lane.b32.xlu0 %v1329, 16
        %v1412 = vpop.permute.xlu0 %1411
        %1413 = vrot.lane.b32.xlu0 %v1330, 16
        %v1414 = vpop.permute.xlu0 %1413
        %1415 = vrot.lane.b32.xlu0 %v1331, 16
        %v1416 = vpop.permute.xlu0 %1415
        %1417 = vrot.lane.b32.xlu0 %v1332, 16
        %v1418 = vpop.permute.xlu0 %1417
        %1419 = vrot.lane.b32.xlu0 %v1333, 16
        %v1420 = vpop.permute.xlu0 %1419
        %1421 = vrot.lane.b32.xlu0 %v1334, 16
        %v1422 = vpop.permute.xlu0 %1421
        %1423 = vrot.lane.b32.xlu0 %v1335, 16
        %v1424 = vpop.permute.xlu0 %1423
        %1425 = vrot.lane.b32.xlu0 %v1336, 16
        %v1426 = vpop.permute.xlu0 %1425
        %1427 = vrot.lane.b32.xlu0 %v1337, 16
        %v1428 = vpop.permute.xlu0 %1427
        %1429 = vrot.lane.b32.xlu0 %v1338, 16
        %v1430 = vpop.permute.xlu0 %1429
        %1431 = vrot.lane.b32.xlu0 %v1339, 16
        %v1432 = vpop.permute.xlu0 %1431
        %1433 = vrot.lane.b32.xlu0 %v1340, 16
        %v1434 = vpop.permute.xlu0 %1433
        %1435 = vrot.lane.b32.xlu0 %v1341, 16
        %v1436 = vpop.permute.xlu0 %1435
        %1437 = vrot.lane.b32.xlu0 %v1342, 16
        %v1438 = vpop.permute.xlu0 %1437
        %1439 = vrot.lane.b32.xlu0 %v1343, 16
        %v1440 = vpop.permute.xlu0 %1439
        %1441 = vrot.lane.b32.xlu0 %v1344, 16
        %v1442 = vpop.permute.xlu0 %1441
        %1443 = vrot.lane.b32.xlu0 %v1345, 16
        %v1444 = vpop.permute.xlu0 %1443
        %1445 = vrot.lane.b32.xlu0 %v1346, 16
        %v1446 = vpop.permute.xlu0 %1445
        %vm1479 = vcmask 195712
        %1480 = vst.msk [vmem:[#allocation3] sm:$0xff] %vm1479, %v1384
        %1481 = vst.msk [vmem:[#allocation3 + $0x8] sm:$0xff] %vm1479, %v1386
        %1482 = vst.msk [vmem:[#allocation3 + $0x10] sm:$0xff] %vm1479, %v1388
        %1483 = vst.msk [vmem:[#allocation3 + $0x18] sm:$0xff] %vm1479, %v1390
        %1484 = vst.msk [vmem:[#allocation3 + $0x20] sm:$0xff] %vm1479, %v1392
        %1485 = vst.msk [vmem:[#allocation3 + $0x28] sm:$0xff] %vm1479, %v1394
        %1486 = vst.msk [vmem:[#allocation3 + $0x30] sm:$0xff] %vm1479, %v1396
        %1487 = vst.msk [vmem:[#allocation3 + $0x38] sm:$0xff] %vm1479, %v1398
        %1488 = vst.msk [vmem:[#allocation3 + $0x40] sm:$0xff] %vm1479, %v1400
        %1489 = vst.msk [vmem:[#allocation3 + $0x48] sm:$0xff] %vm1479, %v1402
        %1490 = vst.msk [vmem:[#allocation3 + $0x50] sm:$0xff] %vm1479, %v1404
        %1491 = vst.msk [vmem:[#allocation3 + $0x58] sm:$0xff] %vm1479, %v1406
        %1492 = vst.msk [vmem:[#allocation3 + $0x60] sm:$0xff] %vm1479, %v1408
        %1493 = vst.msk [vmem:[#allocation3 + $0x68] sm:$0xff] %vm1479, %v1410
        %1494 = vst.msk [vmem:[#allocation3 + $0x70] sm:$0xff] %vm1479, %v1412
        %1495 = vst.msk [vmem:[#allocation3 + $0x78] sm:$0xff] %vm1479, %v1414
        %1496 = vst.msk [vmem:[#allocation3 + $0x80] sm:$0xff] %vm1479, %v1416
        %1497 = vst.msk [vmem:[#allocation3 + $0x88] sm:$0xff] %vm1479, %v1418
        %1498 = vst.msk [vmem:[#allocation3 + $0x90] sm:$0xff] %vm1479, %v1420
        %1499 = vst.msk [vmem:[#allocation3 + $0x98] sm:$0xff] %vm1479, %v1422
        %1500 = vst.msk [vmem:[#allocation3 + $0xa0] sm:$0xff] %vm1479, %v1424
        %1501 = vst.msk [vmem:[#allocation3 + $0xa8] sm:$0xff] %vm1479, %v1426
        %1502 = vst.msk [vmem:[#allocation3 + $0xb0] sm:$0xff] %vm1479, %v1428
        %1503 = vst.msk [vmem:[#allocation3 + $0xb8] sm:$0xff] %vm1479, %v1430
        %1504 = vst.msk [vmem:[#allocation3 + $0xc0] sm:$0xff] %vm1479, %v1432
        %1505 = vst.msk [vmem:[#allocation3 + $0xc8] sm:$0xff] %vm1479, %v1434
        %1506 = vst.msk [vmem:[#allocation3 + $0xd0] sm:$0xff] %vm1479, %v1436
        %1507 = vst.msk [vmem:[#allocation3 + $0xd8] sm:$0xff] %vm1479, %v1438
        %1508 = vst.msk [vmem:[#allocation3 + $0xe0] sm:$0xff] %vm1479, %v1440
        %1509 = vst.msk [vmem:[#allocation3 + $0xe8] sm:$0xff] %vm1479, %v1442
        %1510 = vst.msk [vmem:[#allocation3 + $0xf0] sm:$0xff] %vm1479, %v1444
        %1511 = vst.msk [vmem:[#allocation3 + $0xf8] sm:$0xff] %vm1479, %v1446
        %1514 = vrot.lane.b32.xlu0 %v1317, 40
        %v1515 = vpop.permute.xlu0 %1514
        %1516 = vrot.lane.b32.xlu0 %v1318, 40
        %v1517 = vpop.permute.xlu0 %1516
        %1518 = vrot.lane.b32.xlu0 %v1319, 40
        %v1519 = vpop.permute.xlu0 %1518
        %1520 = vrot.lane.b32.xlu0 %v1320, 40
        %v1521 = vpop.permute.xlu0 %1520
        %1522 = vrot.lane.b32.xlu0 %v1321, 40
        %v1523 = vpop.permute.xlu0 %1522
        %1524 = vrot.lane.b32.xlu0 %v1322, 40
        %v1525 = vpop.permute.xlu0 %1524
        %1526 = vrot.lane.b32.xlu0 %v1323, 40
        %v1527 = vpop.permute.xlu0 %1526
        %1528 = vrot.lane.b32.xlu0 %v1324, 40
        %v1529 = vpop.permute.xlu0 %1528
        %1530 = vrot.lane.b32.xlu0 %v1325, 40
        %v1531 = vpop.permute.xlu0 %1530
        %1532 = vrot.lane.b32.xlu0 %v1326, 40
        %v1533 = vpop.permute.xlu0 %1532
        %1534 = vrot.lane.b32.xlu0 %v1327, 40
        %v1535 = vpop.permute.xlu0 %1534
        %1536 = vrot.lane.b32.xlu0 %v1328, 40
        %v1537 = vpop.permute.xlu0 %1536
        %1538 = vrot.lane.b32.xlu0 %v1329, 40
        %v1539 = vpop.permute.xlu0 %1538
        %1540 = vrot.lane.b32.xlu0 %v1330, 40
        %v1541 = vpop.permute.xlu0 %1540
        %1542 = vrot.lane.b32.xlu0 %v1331, 40
        %v1543 = vpop.permute.xlu0 %1542
        %1544 = vrot.lane.b32.xlu0 %v1332, 40
        %v1545 = vpop.permute.xlu0 %1544
        %1546 = vrot.lane.b32.xlu0 %v1333, 40
        %v1547 = vpop.permute.xlu0 %1546
        %1548 = vrot.lane.b32.xlu0 %v1334, 40
        %v1549 = vpop.permute.xlu0 %1548
        %1550 = vrot.lane.b32.xlu0 %v1335, 40
        %v1551 = vpop.permute.xlu0 %1550
        %1552 = vrot.lane.b32.xlu0 %v1336, 40
        %v1553 = vpop.permute.xlu0 %1552
        %1554 = vrot.lane.b32.xlu0 %v1337, 40
        %v1555 = vpop.permute.xlu0 %1554
        %1556 = vrot.lane.b32.xlu0 %v1338, 40
        %v1557 = vpop.permute.xlu0 %1556
        %1558 = vrot.lane.b32.xlu0 %v1339, 40
        %v1559 = vpop.permute.xlu0 %1558
        %1560 = vrot.lane.b32.xlu0 %v1340, 40
        %v1561 = vpop.permute.xlu0 %1560
        %1562 = vrot.lane.b32.xlu0 %v1341, 40
        %v1563 = vpop.permute.xlu0 %1562
        %1564 = vrot.lane.b32.xlu0 %v1342, 40
        %v1565 = vpop.permute.xlu0 %1564
        %1566 = vrot.lane.b32.xlu0 %v1343, 40
        %v1567 = vpop.permute.xlu0 %1566
        %1568 = vrot.lane.b32.xlu0 %v1344, 40
        %v1569 = vpop.permute.xlu0 %1568
        %1570 = vrot.lane.b32.xlu0 %v1345, 40
        %v1571 = vpop.permute.xlu0 %1570
        %1572 = vrot.lane.b32.xlu0 %v1346, 40
        %v1573 = vpop.permute.xlu0 %1572
        %1574 = vrot.lane.b32.xlu0 %v1347, 40
        %v1575 = vpop.permute.xlu0 %1574
        %1576 = vrot.lane.b32.xlu0 %v1348, 40
        %v1577 = vpop.permute.xlu0 %1576
        %vm1610 = vcmask 392512
        %1611 = vst.msk [vmem:[#allocation3] sm:$0xff] %vm1610, %v1515
        %1612 = vst.msk [vmem:[#allocation3 + $0x8] sm:$0xff] %vm1610, %v1517
        %1613 = vst.msk [vmem:[#allocation3 + $0x10] sm:$0xff] %vm1610, %v1519
        %1614 = vst.msk [vmem:[#allocation3 + $0x18] sm:$0xff] %vm1610, %v1521
        %1615 = vst.msk [vmem:[#allocation3 + $0x20] sm:$0xff] %vm1610, %v1523
        %1616 = vst.msk [vmem:[#allocation3 + $0x28] sm:$0xff] %vm1610, %v1525
        %1617 = vst.msk [vmem:[#allocation3 + $0x30] sm:$0xff] %vm1610, %v1527
        %1618 = vst.msk [vmem:[#allocation3 + $0x38] sm:$0xff] %vm1610, %v1529
        %1619 = vst.msk [vmem:[#allocation3 + $0x40] sm:$0xff] %vm1610, %v1531
        %1620 = vst.msk [vmem:[#allocation3 + $0x48] sm:$0xff] %vm1610, %v1533
        %1621 = vst.msk [vmem:[#allocation3 + $0x50] sm:$0xff] %vm1610, %v1535
        %1622 = vst.msk [vmem:[#allocation3 + $0x58] sm:$0xff] %vm1610, %v1537
        %1623 = vst.msk [vmem:[#allocation3 + $0x60] sm:$0xff] %vm1610, %v1539
        %1624 = vst.msk [vmem:[#allocation3 + $0x68] sm:$0xff] %vm1610, %v1541
        %1625 = vst.msk [vmem:[#allocation3 + $0x70] sm:$0xff] %vm1610, %v1543
        %1626 = vst.msk [vmem:[#allocation3 + $0x78] sm:$0xff] %vm1610, %v1545
        %1627 = vst.msk [vmem:[#allocation3 + $0x80] sm:$0xff] %vm1610, %v1547
        %1628 = vst.msk [vmem:[#allocation3 + $0x88] sm:$0xff] %vm1610, %v1549
        %1629 = vst.msk [vmem:[#allocation3 + $0x90] sm:$0xff] %vm1610, %v1551
        %1630 = vst.msk [vmem:[#allocation3 + $0x98] sm:$0xff] %vm1610, %v1553
        %1631 = vst.msk [vmem:[#allocation3 + $0xa0] sm:$0xff] %vm1610, %v1555
        %1632 = vst.msk [vmem:[#allocation3 + $0xa8] sm:$0xff] %vm1610, %v1557
        %1633 = vst.msk [vmem:[#allocation3 + $0xb0] sm:$0xff] %vm1610, %v1559
        %1634 = vst.msk [vmem:[#allocation3 + $0xb8] sm:$0xff] %vm1610, %v1561
        %1635 = vst.msk [vmem:[#allocation3 + $0xc0] sm:$0xff] %vm1610, %v1563
        %1636 = vst.msk [vmem:[#allocation3 + $0xc8] sm:$0xff] %vm1610, %v1565
        %1637 = vst.msk [vmem:[#allocation3 + $0xd0] sm:$0xff] %vm1610, %v1567
        %1638 = vst.msk [vmem:[#allocation3 + $0xd8] sm:$0xff] %vm1610, %v1569
        %1639 = vst.msk [vmem:[#allocation3 + $0xe0] sm:$0xff] %vm1610, %v1571
        %1640 = vst.msk [vmem:[#allocation3 + $0xe8] sm:$0xff] %vm1610, %v1573
        %1641 = vst.msk [vmem:[#allocation3 + $0xf0] sm:$0xff] %vm1610, %v1575
        %1642 = vst.msk [vmem:[#allocation3 + $0xf8] sm:$0xff] %vm1610, %v1577
        %1645 = vrot.lane.b32.xlu0 %v1319, 64
        %v1646 = vpop.permute.xlu0 %1645
        %1647 = vrot.lane.b32.xlu0 %v1320, 64
        %v1648 = vpop.permute.xlu0 %1647
        %1649 = vrot.lane.b32.xlu0 %v1321, 64
        %v1650 = vpop.permute.xlu0 %1649
        %1651 = vrot.lane.b32.xlu0 %v1322, 64
        %v1652 = vpop.permute.xlu0 %1651
        %1653 = vrot.lane.b32.xlu0 %v1323, 64
        %v1654 = vpop.permute.xlu0 %1653
        %1655 = vrot.lane.b32.xlu0 %v1324, 64
        %v1656 = vpop.permute.xlu0 %1655
        %1657 = vrot.lane.b32.xlu0 %v1325, 64
        %v1658 = vpop.permute.xlu0 %1657
        %1659 = vrot.lane.b32.xlu0 %v1326, 64
        %v1660 = vpop.permute.xlu0 %1659
        %1661 = vrot.lane.b32.xlu0 %v1327, 64
        %v1662 = vpop.permute.xlu0 %1661
        %1663 = vrot.lane.b32.xlu0 %v1328, 64
        %v1664 = vpop.permute.xlu0 %1663
        %1665 = vrot.lane.b32.xlu0 %v1329, 64
        %v1666 = vpop.permute.xlu0 %1665
        %1667 = vrot.lane.b32.xlu0 %v1330, 64
        %v1668 = vpop.permute.xlu0 %1667
        %1669 = vrot.lane.b32.xlu0 %v1331, 64
        %v1670 = vpop.permute.xlu0 %1669
        %1671 = vrot.lane.b32.xlu0 %v1332, 64
        %v1672 = vpop.permute.xlu0 %1671
        %1673 = vrot.lane.b32.xlu0 %v1333, 64
        %v1674 = vpop.permute.xlu0 %1673
        %1675 = vrot.lane.b32.xlu0 %v1334, 64
        %v1676 = vpop.permute.xlu0 %1675
        %1677 = vrot.lane.b32.xlu0 %v1335, 64
        %v1678 = vpop.permute.xlu0 %1677
        %1679 = vrot.lane.b32.xlu0 %v1336, 64
        %v1680 = vpop.permute.xlu0 %1679
        %1681 = vrot.lane.b32.xlu0 %v1337, 64
        %v1682 = vpop.permute.xlu0 %1681
        %1683 = vrot.lane.b32.xlu0 %v1338, 64
        %v1684 = vpop.permute.xlu0 %1683
        %1685 = vrot.lane.b32.xlu0 %v1339, 64
        %v1686 = vpop.permute.xlu0 %1685
        %1687 = vrot.lane.b32.xlu0 %v1340, 64
        %v1688 = vpop.permute.xlu0 %1687
        %1689 = vrot.lane.b32.xlu0 %v1341, 64
        %v1690 = vpop.permute.xlu0 %1689
        %1691 = vrot.lane.b32.xlu0 %v1342, 64
        %v1692 = vpop.permute.xlu0 %1691
        %1693 = vrot.lane.b32.xlu0 %v1343, 64
        %v1694 = vpop.permute.xlu0 %1693
        %1695 = vrot.lane.b32.xlu0 %v1344, 64
        %v1696 = vpop.permute.xlu0 %1695
        %1697 = vrot.lane.b32.xlu0 %v1345, 64
        %v1698 = vpop.permute.xlu0 %1697
        %1699 = vrot.lane.b32.xlu0 %v1346, 64
        %v1700 = vpop.permute.xlu0 %1699
        %1701 = vrot.lane.b32.xlu0 %v1347, 64
        %v1702 = vpop.permute.xlu0 %1701
        %1703 = vrot.lane.b32.xlu0 %v1348, 64
        %v1704 = vpop.permute.xlu0 %1703
        %1705 = vrot.lane.b32.xlu0 %v1349, 64
        %v1706 = vpop.permute.xlu0 %1705
        %1707 = vrot.lane.b32.xlu0 %v1350, 64
        %v1708 = vpop.permute.xlu0 %1707
        %vm1741 = vcmask 589312
        %1742 = vst.msk [vmem:[#allocation3] sm:$0xff] %vm1741, %v1646
        %1743 = vst.msk [vmem:[#allocation3 + $0x8] sm:$0xff] %vm1741, %v1648
        %1744 = vst.msk [vmem:[#allocation3 + $0x10] sm:$0xff] %vm1741, %v1650
        %1745 = vst.msk [vmem:[#allocation3 + $0x18] sm:$0xff] %vm1741, %v1652
        %1746 = vst.msk [vmem:[#allocation3 + $0x20] sm:$0xff] %vm1741, %v1654
        %1747 = vst.msk [vmem:[#allocation3 + $0x28] sm:$0xff] %vm1741, %v1656
        %1748 = vst.msk [vmem:[#allocation3 + $0x30] sm:$0xff] %vm1741, %v1658
        %1749 = vst.msk [vmem:[#allocation3 + $0x38] sm:$0xff] %vm1741, %v1660
        %1750 = vst.msk [vmem:[#allocation3 + $0x40] sm:$0xff] %vm1741, %v1662
        %1751 = vst.msk [vmem:[#allocation3 + $0x48] sm:$0xff] %vm1741, %v1664
        %1752 = vst.msk [vmem:[#allocation3 + $0x50] sm:$0xff] %vm1741, %v1666
        %1753 = vst.msk [vmem:[#allocation3 + $0x58] sm:$0xff] %vm1741, %v1668
        %1754 = vst.msk [vmem:[#allocation3 + $0x60] sm:$0xff] %vm1741, %v1670
        %1755 = vst.msk [vmem:[#allocation3 + $0x68] sm:$0xff] %vm1741, %v1672
        %1756 = vst.msk [vmem:[#allocation3 + $0x70] sm:$0xff] %vm1741, %v1674
        %1757 = vst.msk [vmem:[#allocation3 + $0x78] sm:$0xff] %vm1741, %v1676
        %1758 = vst.msk [vmem:[#allocation3 + $0x80] sm:$0xff] %vm1741, %v1678
        %1759 = vst.msk [vmem:[#allocation3 + $0x88] sm:$0xff] %vm1741, %v1680
        %1760 = vst.msk [vmem:[#allocation3 + $0x90] sm:$0xff] %vm1741, %v1682
        %1761 = vst.msk [vmem:[#allocation3 + $0x98] sm:$0xff] %vm1741, %v1684
        %1762 = vst.msk [vmem:[#allocation3 + $0xa0] sm:$0xff] %vm1741, %v1686
        %1763 = vst.msk [vmem:[#allocation3 + $0xa8] sm:$0xff] %vm1741, %v1688
        %1764 = vst.msk [vmem:[#allocation3 + $0xb0] sm:$0xff] %vm1741, %v1690
        %1765 = vst.msk [vmem:[#allocation3 + $0xb8] sm:$0xff] %vm1741, %v1692
        %1766 = vst.msk [vmem:[#allocation3 + $0xc0] sm:$0xff] %vm1741, %v1694
        %1767 = vst.msk [vmem:[#allocation3 + $0xc8] sm:$0xff] %vm1741, %v1696
        %1768 = vst.msk [vmem:[#allocation3 + $0xd0] sm:$0xff] %vm1741, %v1698
        %1769 = vst.msk [vmem:[#allocation3 + $0xd8] sm:$0xff] %vm1741, %v1700
        %1770 = vst.msk [vmem:[#allocation3 + $0xe0] sm:$0xff] %vm1741, %v1702
        %1771 = vst.msk [vmem:[#allocation3 + $0xe8] sm:$0xff] %vm1741, %v1704
        %1772 = vst.msk [vmem:[#allocation3 + $0xf0] sm:$0xff] %vm1741, %v1706
        %1773 = vst.msk [vmem:[#allocation3 + $0xf8] sm:$0xff] %vm1741, %v1708
        %v1774 = vld [vmem:[#allocation3] sm:$0xff]
        %v1775 = vld [vmem:[#allocation3 + $0x8] sm:$0xff]
        %v1776 = vld [vmem:[#allocation3 + $0x10] sm:$0xff]
        %v1777 = vld [vmem:[#allocation3 + $0x18] sm:$0xff]
        %v1778 = vld [vmem:[#allocation3 + $0x20] sm:$0xff]
        %v1779 = vld [vmem:[#allocation3 + $0x28] sm:$0xff]
        %v1780 = vld [vmem:[#allocation3 + $0x30] sm:$0xff]
        %v1781 = vld [vmem:[#allocation3 + $0x38] sm:$0xff]
        %v1782 = vld [vmem:[#allocation3 + $0x40] sm:$0xff]
        %v1783 = vld [vmem:[#allocation3 + $0x48] sm:$0xff]
        %v1784 = vld [vmem:[#allocation3 + $0x50] sm:$0xff]
        %v1785 = vld [vmem:[#allocation3 + $0x58] sm:$0xff]
        %v1786 = vld [vmem:[#allocation3 + $0x60] sm:$0xff]
        %v1787 = vld [vmem:[#allocation3 + $0x68] sm:$0xff]
        %v1788 = vld [vmem:[#allocation3 + $0x70] sm:$0xff]
        %v1789 = vld [vmem:[#allocation3 + $0x78] sm:$0xff]
        %v1790 = vld [vmem:[#allocation3 + $0x80] sm:$0xff]
        %v1791 = vld [vmem:[#allocation3 + $0x88] sm:$0xff]
        %v1792 = vld [vmem:[#allocation3 + $0x90] sm:$0xff]
        %v1793 = vld [vmem:[#allocation3 + $0x98] sm:$0xff]
        %v1794 = vld [vmem:[#allocation3 + $0xa0] sm:$0xff]
        %v1795 = vld [vmem:[#allocation3 + $0xa8] sm:$0xff]
        %v1796 = vld [vmem:[#allocation3 + $0xb0] sm:$0xff]
        %v1797 = vld [vmem:[#allocation3 + $0xb8] sm:$0xff]
        %v1798 = vld [vmem:[#allocation3 + $0xc0] sm:$0xff]
        %v1799 = vld [vmem:[#allocation3 + $0xc8] sm:$0xff]
        %v1800 = vld [vmem:[#allocation3 + $0xd0] sm:$0xff]
        %v1801 = vld [vmem:[#allocation3 + $0xd8] sm:$0xff]
        %v1802 = vld [vmem:[#allocation3 + $0xe0] sm:$0xff]
        %v1803 = vld [vmem:[#allocation3 + $0xe8] sm:$0xff]
        %v1804 = vld [vmem:[#allocation3 + $0xf0] sm:$0xff]
        %v1805 = vld [vmem:[#allocation3 + $0xf8] sm:$0xff]
        %v1806 = vpack.c.bf16 %v1775, %v1774
        %v1807 = vpack.c.bf16 %v1777, %v1776
        %v1808 = vpack.c.bf16 %v1779, %v1778
        %v1809 = vpack.c.bf16 %v1781, %v1780
        %v1810 = vpack.c.bf16 %v1783, %v1782
        %v1811 = vpack.c.bf16 %v1785, %v1784
        %v1812 = vpack.c.bf16 %v1787, %v1786
        %v1813 = vpack.c.bf16 %v1789, %v1788
        %v1814 = vpack.c.bf16 %v1791, %v1790
        %v1815 = vpack.c.bf16 %v1793, %v1792
        %v1816 = vpack.c.bf16 %v1795, %v1794
        %v1817 = vpack.c.bf16 %v1797, %v1796
        %v1818 = vpack.c.bf16 %v1799, %v1798
        %v1819 = vpack.c.bf16 %v1801, %v1800
        %v1820 = vpack.c.bf16 %v1803, %v1802
        %v1821 = vpack.c.bf16 %v1805, %v1804
        %v1822 = vld [vmem:[%s1] sm:$0xf]
        %v1823 = vld [vmem:[%s1 + $0x4] sm:$0xf]
        %v1824 = vld [vmem:[%s1 + $0x8] sm:$0xf]
        %v1825 = vld [vmem:[%s1 + $0xc] sm:$0xf]
        %v1826 = vld [vmem:[%s1 + $0x10] sm:$0xf]
        %v1827 = vld [vmem:[%s1 + $0x14] sm:$0xf]
        %v1828 = vld [vmem:[%s1 + $0x18] sm:$0xf]
        %v1829 = vld [vmem:[%s1 + $0x1c] sm:$0xf]
        %v1830 = vld [vmem:[%s1 + $0x20] sm:$0xf]
        %v1831 = vld [vmem:[%s1 + $0x24] sm:$0xf]
        %v1832 = vld [vmem:[%s1 + $0x28] sm:$0xf]
        %v1833 = vld [vmem:[%s1 + $0x2c] sm:$0xf]
        %v1834 = vld [vmem:[%s1 + $0x30] sm:$0xf]
        %v1835 = vld [vmem:[%s1 + $0x34] sm:$0xf]
        %v1836 = vld [vmem:[%s1 + $0x38] sm:$0xf]
        %v1837 = vld [vmem:[%s1 + $0x3c] sm:$0xf]
        %v1854 = vunpack.c.l.b16 %v1822
        %v1855 = vunpack.c.l.b16 %v1823
        %v1856 = vunpack.c.l.b16 %v1824
        %v1857 = vunpack.c.l.b16 %v1825
        %v1858 = vunpack.c.l.b16 %v1826
        %v1859 = vunpack.c.l.b16 %v1827
        %v1860 = vunpack.c.l.b16 %v1828
        %v1861 = vunpack.c.l.b16 %v1829
        %v1862 = vunpack.c.l.b16 %v1830
        %v1863 = vunpack.c.l.b16 %v1831
        %v1864 = vunpack.c.l.b16 %v1832
        %v1865 = vunpack.c.l.b16 %v1833
        %v1866 = vunpack.c.l.b16 %v1834
        %v1867 = vunpack.c.l.b16 %v1835
        %v1868 = vunpack.c.l.b16 %v1836
        %v1869 = vunpack.c.l.b16 %v1837
        %v1870 = vpack.c.b16 %v1855, %v1854
        %v1871 = vpack.c.b16 %v1857, %v1856
        %v1872 = vpack.c.b16 %v1859, %v1858
        %v1873 = vpack.c.b16 %v1861, %v1860
        %v1874 = vpack.c.b16 %v1863, %v1862
        %v1875 = vpack.c.b16 %v1865, %v1864
        %v1876 = vpack.c.b16 %v1867, %v1866
        %v1877 = vpack.c.b16 %v1869, %v1868
        %1886 = vmatpush.bf16.msra.mxu0 %v1877
        %1887 = vmatpush.bf16.msra.mxu0 %v1876
        %1888 = vmatpush.bf16.msra.mxu0 %v1875
        %1889 = vmatpush.bf16.msra.mxu0 %v1874
        %1890 = vmatpush.bf16.msra.mxu0 %v1873
        %1891 = vmatpush.bf16.msra.mxu0 %v1872
        %1892 = vmatpush.bf16.msra.mxu0 %v1871
        %1893 = vmatpush.bf16.msra.mxu0 %v1870
        %1894 = vmatmul.bf16.gmra.mxu0 %v1806
        %v1895 = vpop.f32.mrf.mxu0
        %v1896 = vadd.f32 0.0, %v1895
        %v1897 = vpop.f32.mrf.mxu0
        %v1898 = vadd.f32 0.0, %v1897
        %1899 = vmatmul.bf16.gmra.mxu0 %v1807
        %v1900 = vpop.f32.mrf.mxu0
        %v1901 = vadd.f32 0.0, %v1900
        %v1902 = vpop.f32.mrf.mxu0
        %v1903 = vadd.f32 0.0, %v1902
        %1904 = vmatmul.bf16.gmra.mxu0 %v1808
        %v1905 = vpop.f32.mrf.mxu0
        %v1906 = vadd.f32 0.0, %v1905
        %v1907 = vpop.f32.mrf.mxu0
        %v1908 = vadd.f32 0.0, %v1907
        %1909 = vmatmul.bf16.gmra.mxu0 %v1809
        %v1910 = vpop.f32.mrf.mxu0
        %v1911 = vadd.f32 0.0, %v1910
        %v1912 = vpop.f32.mrf.mxu0
        %v1913 = vadd.f32 0.0, %v1912
        %1914 = vmatmul.bf16.gmra.mxu0 %v1810
        %v1915 = vpop.f32.mrf.mxu0
        %v1916 = vadd.f32 0.0, %v1915
        %v1917 = vpop.f32.mrf.mxu0
        %v1918 = vadd.f32 0.0, %v1917
        %1919 = vmatmul.bf16.gmra.mxu0 %v1811
        %v1920 = vpop.f32.mrf.mxu0
        %v1921 = vadd.f32 0.0, %v1920
        %v1922 = vpop.f32.mrf.mxu0
        %v1923 = vadd.f32 0.0, %v1922
        %1924 = vmatmul.bf16.gmra.mxu0 %v1812
        %v1925 = vpop.f32.mrf.mxu0
        %v1926 = vadd.f32 0.0, %v1925
        %v1927 = vpop.f32.mrf.mxu0
        %v1928 = vadd.f32 0.0, %v1927
        %1929 = vmatmul.bf16.gmra.mxu0 %v1813
        %v1930 = vpop.f32.mrf.mxu0
        %v1931 = vadd.f32 0.0, %v1930
        %v1932 = vpop.f32.mrf.mxu0
        %v1933 = vadd.f32 0.0, %v1932
        %1934 = vmatmul.bf16.gmra.mxu0 %v1814
        %v1935 = vpop.f32.mrf.mxu0
        %v1936 = vadd.f32 0.0, %v1935
        %v1937 = vpop.f32.mrf.mxu0
        %v1938 = vadd.f32 0.0, %v1937
        %1939 = vmatmul.bf16.gmra.mxu0 %v1815
        %v1940 = vpop.f32.mrf.mxu0
        %v1941 = vadd.f32 0.0, %v1940
        %v1942 = vpop.f32.mrf.mxu0
        %v1943 = vadd.f32 0.0, %v1942
        %1944 = vmatmul.bf16.gmra.mxu0 %v1816
        %v1945 = vpop.f32.mrf.mxu0
        %v1946 = vadd.f32 0.0, %v1945
        %v1947 = vpop.f32.mrf.mxu0
        %v1948 = vadd.f32 0.0, %v1947
        %1949 = vmatmul.bf16.gmra.mxu0 %v1817
        %v1950 = vpop.f32.mrf.mxu0
        %v1951 = vadd.f32 0.0, %v1950
        %v1952 = vpop.f32.mrf.mxu0
        %v1953 = vadd.f32 0.0, %v1952
        %1954 = vmatmul.bf16.gmra.mxu0 %v1818
        %v1955 = vpop.f32.mrf.mxu0
        %v1956 = vadd.f32 0.0, %v1955
        %v1957 = vpop.f32.mrf.mxu0
        %v1958 = vadd.f32 0.0, %v1957
        %1959 = vmatmul.bf16.gmra.mxu0 %v1819
        %v1960 = vpop.f32.mrf.mxu0
        %v1961 = vadd.f32 0.0, %v1960
        %v1962 = vpop.f32.mrf.mxu0
        %v1963 = vadd.f32 0.0, %v1962
        %1964 = vmatmul.bf16.gmra.mxu0 %v1820
        %v1965 = vpop.f32.mrf.mxu0
        %v1966 = vadd.f32 0.0, %v1965
        %v1967 = vpop.f32.mrf.mxu0
        %v1968 = vadd.f32 0.0, %v1967
        %1969 = vmatmul.bf16.gmra.mxu0 %v1821
        %v1970 = vpop.f32.mrf.mxu0
        %v1971 = vadd.f32 0.0, %v1970
        %v1972 = vpop.f32.mrf.mxu0
        %v1973 = vadd.f32 0.0, %v1972
        %1974 = vdwg.mxu0
        %v1975 = vadd.f32 %v1896, %v1898
        %v1976 = vadd.f32 %v1975, %v1901
        %v1977 = vadd.f32 %v1976, %v1903
        %v1978 = vadd.f32 %v1977, %v1906
        %v1979 = vadd.f32 %v1978, %v1908
        %v1980 = vadd.f32 %v1979, %v1911
        %v1981 = vadd.f32 %v1980, %v1913
        %v1982 = vadd.f32 %v1981, %v1916
        %v1983 = vadd.f32 %v1982, %v1918
        %v1984 = vadd.f32 %v1983, %v1921
        %v1985 = vadd.f32 %v1984, %v1923
        %v1986 = vadd.f32 %v1985, %v1926
        %v1987 = vadd.f32 %v1986, %v1928
        %v1988 = vadd.f32 %v1987, %v1931
        %v1989 = vadd.f32 %v1988, %v1933
        %v1990 = vadd.f32 %v1989, %v1936
        %v1991 = vadd.f32 %v1990, %v1938
        %v1992 = vadd.f32 %v1991, %v1941
        %v1993 = vadd.f32 %v1992, %v1943
        %v1994 = vadd.f32 %v1993, %v1946
        %v1995 = vadd.f32 %v1994, %v1948
        %v1996 = vadd.f32 %v1995, %v1951
        %v1997 = vadd.f32 %v1996, %v1953
        %v1998 = vadd.f32 %v1997, %v1956
        %v1999 = vadd.f32 %v1998, %v1958
        %v2000 = vadd.f32 %v1999, %v1961
        %v2001 = vadd.f32 %v2000, %v1963
        %v2002 = vadd.f32 %v2001, %v1966
        %v2003 = vadd.f32 %v2002, %v1968
        %v2004 = vadd.f32 %v2003, %v1971
        %v2005 = vadd.f32 %v2004, %v1973
        %v2006 = vrot.slane %v2005, 4
        %v2007 = vadd.f32 %v2005, %v2006
        %v2008 = vrot.slane %v2007, 2
        %v2009 = vadd.f32 %v2007, %v2008
        %v2010 = vrot.slane %v2009, 1
        %v2011 = vadd.f32 %v2009, %v2010
        %v2012 = vmul.f32 %v2011, 0.00390625
        %v2013 = vsub.f32 %v1896, %v2012
        %v2014 = vsub.f32 %v1898, %v2012
        %v2015 = vsub.f32 %v1901, %v2012
        %v2016 = vsub.f32 %v1903, %v2012
        %v2017 = vsub.f32 %v1906, %v2012
        %v2018 = vsub.f32 %v1908, %v2012
        %v2019 = vsub.f32 %v1911, %v2012
        %v2020 = vsub.f32 %v1913, %v2012
        %v2021 = vsub.f32 %v1916, %v2012
        %v2022 = vsub.f32 %v1918, %v2012
        %v2023 = vsub.f32 %v1921, %v2012
        %v2024 = vsub.f32 %v1923, %v2012
        %v2025 = vsub.f32 %v1926, %v2012
        %v2026 = vsub.f32 %v1928, %v2012
        %v2027 = vsub.f32 %v1931, %v2012
        %v2028 = vsub.f32 %v1933, %v2012
        %v2029 = vsub.f32 %v1936, %v2012
        %v2030 = vsub.f32 %v1938, %v2012
        %v2031 = vsub.f32 %v1941, %v2012
        %v2032 = vsub.f32 %v1943, %v2012
        %v2033 = vsub.f32 %v1946, %v2012
        %v2034 = vsub.f32 %v1948, %v2012
        %v2035 = vsub.f32 %v1951, %v2012
        %v2036 = vsub.f32 %v1953, %v2012
        %v2037 = vsub.f32 %v1956, %v2012
        %v2038 = vsub.f32 %v1958, %v2012
        %v2039 = vsub.f32 %v1961, %v2012
        %v2040 = vsub.f32 %v1963, %v2012
        %v2041 = vsub.f32 %v1966, %v2012
        %v2042 = vsub.f32 %v1968, %v2012
        %v2043 = vsub.f32 %v1971, %v2012
        %v2044 = vsub.f32 %v1973, %v2012
        %2045 = vst [vmem:[%s254] sm:$0x1] %v2012
        %v2046 = vmul.f32 %v2013, %v2013
        %v2047 = vmul.f32 %v2014, %v2014
        %v2048 = vmul.f32 %v2015, %v2015
        %v2049 = vmul.f32 %v2016, %v2016
        %v2050 = vmul.f32 %v2017, %v2017
        %v2051 = vmul.f32 %v2018, %v2018
        %v2052 = vmul.f32 %v2019, %v2019
        %v2053 = vmul.f32 %v2020, %v2020
        %v2054 = vmul.f32 %v2021, %v2021
        %v2055 = vmul.f32 %v2022, %v2022
        %v2056 = vmul.f32 %v2023, %v2023
        %v2057 = vmul.f32 %v2024, %v2024
        %v2058 = vmul.f32 %v2025, %v2025
        %v2059 = vmul.f32 %v2026, %v2026
        %v2060 = vmul.f32 %v2027, %v2027
        %v2061 = vmul.f32 %v2028, %v2028
        %v2062 = vmul.f32 %v2029, %v2029
        %v2063 = vmul.f32 %v2030, %v2030
        %v2064 = vmul.f32 %v2031, %v2031
        %v2065 = vmul.f32 %v2032, %v2032
        %v2066 = vmul.f32 %v2033, %v2033
        %v2067 = vmul.f32 %v2034, %v2034
        %v2068 = vmul.f32 %v2035, %v2035
        %v2069 = vmul.f32 %v2036, %v2036
        %v2070 = vmul.f32 %v2037, %v2037
        %v2071 = vmul.f32 %v2038, %v2038
        %v2072 = vmul.f32 %v2039, %v2039
        %v2073 = vmul.f32 %v2040, %v2040
        %v2074 = vmul.f32 %v2041, %v2041
        %v2075 = vmul.f32 %v2042, %v2042
        %v2076 = vmul.f32 %v2043, %v2043
        %v2077 = vmul.f32 %v2044, %v2044
        %v2078 = vadd.f32 %v2046, %v2047
        %v2079 = vadd.f32 %v2078, %v2048
        %v2080 = vadd.f32 %v2079, %v2049
        %v2081 = vadd.f32 %v2080, %v2050
        %v2082 = vadd.f32 %v2081, %v2051
        %v2083 = vadd.f32 %v2082, %v2052
        %v2084 = vadd.f32 %v2083, %v2053
        %v2085 = vadd.f32 %v2084, %v2054
        %v2086 = vadd.f32 %v2085, %v2055
        %v2087 = vadd.f32 %v2086, %v2056
        %v2088 = vadd.f32 %v2087, %v2057
        %v2089 = vadd.f32 %v2088, %v2058
        %v2090 = vadd.f32 %v2089, %v2059
        %v2091 = vadd.f32 %v2090, %v2060
        %v2092 = vadd.f32 %v2091, %v2061
        %v2093 = vadd.f32 %v2092, %v2062
        %v2094 = vadd.f32 %v2093, %v2063
        %v2095 = vadd.f32 %v2094, %v2064
        %v2096 = vadd.f32 %v2095, %v2065
        %v2097 = vadd.f32 %v2096, %v2066
        %v2098 = vadd.f32 %v2097, %v2067
        %v2099 = vadd.f32 %v2098, %v2068
        %v2100 = vadd.f32 %v2099, %v2069
        %v2101 = vadd.f32 %v2100, %v2070
        %v2102 = vadd.f32 %v2101, %v2071
        %v2103 = vadd.f32 %v2102, %v2072
        %v2104 = vadd.f32 %v2103, %v2073
        %v2105 = vadd.f32 %v2104, %v2074
        %v2106 = vadd.f32 %v2105, %v2075
        %v2107 = vadd.f32 %v2106, %v2076
        %v2108 = vadd.f32 %v2107, %v2077
        %v2109 = vrot.slane %v2108, 4
        %v2110 = vadd.f32 %v2108, %v2109
        %v2111 = vrot.slane %v2110, 2
        %v2112 = vadd.f32 %v2110, %v2111
        %v2113 = vrot.slane %v2112, 1
        %v2114 = vadd.f32 %v2112, %v2113
        %2115 = vst [vmem:[%s260] sm:$0x1] %v2114
        %2116 = vst.msk [vmem:[%s270] sm:$0xff] %vm375, %v1896
        %2117 = vst.msk [vmem:[%s270 + $0x8] sm:$0xff] %vm375, %v1898
        %2118 = vst.msk [vmem:[%s270 + $0x10] sm:$0xff] %vm375, %v1901
        %2119 = vst.msk [vmem:[%s270 + $0x18] sm:$0xff] %vm375, %v1903
        %2120 = vst.msk [vmem:[%s270 + $0x20] sm:$0xff] %vm375, %v1906
        %2121 = vst.msk [vmem:[%s270 + $0x28] sm:$0xff] %vm375, %v1908
        %2122 = vst.msk [vmem:[%s270 + $0x30] sm:$0xff] %vm375, %v1911
        %2123 = vst.msk [vmem:[%s270 + $0x38] sm:$0xff] %vm375, %v1913
        %2124 = vst.msk [vmem:[%s270 + $0x40] sm:$0xff] %vm375, %v1916
        %2125 = vst.msk [vmem:[%s270 + $0x48] sm:$0xff] %vm375, %v1918
        %2126 = vst.msk [vmem:[%s270 + $0x50] sm:$0xff] %vm375, %v1921
        %2127 = vst.msk [vmem:[%s270 + $0x58] sm:$0xff] %vm375, %v1923
        %2128 = vst.msk [vmem:[%s270 + $0x60] sm:$0xff] %vm375, %v1926
        %2129 = vst.msk [vmem:[%s270 + $0x68] sm:$0xff] %vm375, %v1928
        %2130 = vst.msk [vmem:[%s270 + $0x70] sm:$0xff] %vm375, %v1931
        %2131 = vst.msk [vmem:[%s270 + $0x78] sm:$0xff] %vm375, %v1933
        %2132 = vst.msk [vmem:[%s270 + $0x80] sm:$0xff] %vm375, %v1936
        %2133 = vst.msk [vmem:[%s270 + $0x88] sm:$0xff] %vm375, %v1938
        %2134 = vst.msk [vmem:[%s270 + $0x90] sm:$0xff] %vm375, %v1941
        %2135 = vst.msk [vmem:[%s270 + $0x98] sm:$0xff] %vm375, %v1943
        %2136 = vst.msk [vmem:[%s270 + $0xa0] sm:$0xff] %vm375, %v1946
        %2137 = vst.msk [vmem:[%s270 + $0xa8] sm:$0xff] %vm375, %v1948
        %2138 = vst.msk [vmem:[%s270 + $0xb0] sm:$0xff] %vm375, %v1951
        %2139 = vst.msk [vmem:[%s270 + $0xb8] sm:$0xff] %vm375, %v1953
        %2140 = vst.msk [vmem:[%s270 + $0xc0] sm:$0xff] %vm375, %v1956
        %2141 = vst.msk [vmem:[%s270 + $0xc8] sm:$0xff] %vm375, %v1958
        %2142 = vst.msk [vmem:[%s270 + $0xd0] sm:$0xff] %vm375, %v1961
        %2143 = vst.msk [vmem:[%s270 + $0xd8] sm:$0xff] %vm375, %v1963
        %2144 = vst.msk [vmem:[%s270 + $0xe0] sm:$0xff] %vm375, %v1966
        %2145 = vst.msk [vmem:[%s270 + $0xe8] sm:$0xff] %vm375, %v1968
        %2146 = vst.msk [vmem:[%s270 + $0xf0] sm:$0xff] %vm375, %v1971
        %2147 = vst.msk [vmem:[%s270 + $0xf8] sm:$0xff] %vm375, %v1973
        %p2148 = scmp.lt.s32.totalorder %s24, 1
        %s2149 = scalar_select %p2148, %s24, 1
        %s2150 = smul.addr %s2149, 32
        %s2151 = smul.addr %s2150, 8
        %s2152 = scalar_lea.vmem %s4, %s2151
        %s2153 = sand.u32 %s147, 1
        %s2154 = scalar_lea.sflag [#allocation5], %s2153
        %s2155 = sand.u32 %s147, 1
        %s2156 = scalar_lea.vmem [#allocation4], %s2155
        %s2157 = sand.u32 %s173, 1
        %s2158 = scalar_lea.sflag [#allocation7], %s2157
        %s2159 = sand.u32 %s173, 1
        %s2160 = scalar_lea.vmem [#allocation6], %s2159
        // Predicated region
        $region37: #{tpu_custom_call.1} parent=35 // pred_check
          %p2161 = pneg %p131
        $region38: #{tpu_custom_call.1} parent=35 // pred_check_branch
          %2163 = sbr.rel (%p2161) target = $region40
        $region39: #{tpu_custom_call.1} parent=35 // pred_region
          _
        $region40: #{tpu_custom_call.1} parent=35 // pred_fallthru
          _
        // Predicated region
        $region41: #{tpu_custom_call.1} parent=35 // pred_check
          %p2164 = pneg %p157
        $region42: #{tpu_custom_call.1} parent=35 // pred_check_branch
          %2166 = sbr.rel (%p2164) target = $region44
        $region43: #{tpu_custom_call.1} parent=35 // pred_region
          %2168 = vsyncadd %s2154, 0
          %s2169 = scalar_lea.hbm %s5, %s24
          %s2171 = sshll.u32 %s2156, 4
          %s2172 = int_to_ptr.vmem [resolvable:$true] %s2171
          %s2173 = sshll.u32 %s2169, 4
          %s2174 = int_to_ptr.hbm [resolvable:$true] %s2173
          %2176 = dma.vmem_to_hbm [thread:$0]  %s2172, 16, %s2174, %s2154
        $region44: #{tpu_custom_call.1} parent=35 // pred_fallthru
          _
        // Predicated region
        $region45: #{tpu_custom_call.1} parent=35 // pred_check
          %p2177 = pneg %p183
        $region46: #{tpu_custom_call.1} parent=35 // pred_check_branch
          %2179 = sbr.rel (%p2177) target = $region48
        $region47: #{tpu_custom_call.1} parent=35 // pred_region
          %2181 = vsyncadd %s2158, 0
          %s2182 = scalar_lea.hbm %s6, %s24
          %s2184 = sshll.u32 %s2160, 4
          %s2185 = int_to_ptr.vmem [resolvable:$true] %s2184
          %s2186 = sshll.u32 %s2182, 4
          %s2187 = int_to_ptr.hbm [resolvable:$true] %s2186
          %2189 = dma.vmem_to_hbm [thread:$0]  %s2185, 16, %s2187, %s2158
        $region48: #{tpu_custom_call.1} parent=35 // pred_fallthru
          _
      $region36: #{tpu_custom_call.1} parent=5 // pred_fallthru
        _
      %p2190 = scmp.le.s32.totalorder 2, %s19
      // Predicated region
      $region49: #{tpu_custom_call.1} parent=5 // pred_check
        %p2191 = pneg %p2190
      $region50: #{tpu_custom_call.1} parent=5 // pred_check_branch
        %2193 = sbr.rel (%p2191) target = $region52
      $region51: #{tpu_custom_call.1} parent=5 // pred_region
        %s2194 = ssub.s32 %s19, 2
        // Predicated region
        $region53: #{tpu_custom_call.1} parent=51 // pred_check
          %p2195 = pneg %p137
        $region54: #{tpu_custom_call.1} parent=51 // pred_check_branch
          %2197 = sbr.rel (%p2195) target = $region56
        $region55: #{tpu_custom_call.1} parent=51 // pred_region
          %p2198 = scmp.lt.s32.totalorder %s25, 1
          %s2199 = scalar_select %p2198, %s25, 1
          %s2200 = smul.addr %s2199, 32
          %s2201 = smul.addr %s2200, 8
          %s2202 = scalar_lea.vmem %s4, %s2201
        $region56: #{tpu_custom_call.1} parent=51 // pred_fallthru
          _
        // Predicated region
        $region57: #{tpu_custom_call.1} parent=51 // pred_check
          %p2203 = pneg %p163
        $region58: #{tpu_custom_call.1} parent=51 // pred_check_branch
          %2205 = sbr.rel (%p2203) target = $region60
        $region59: #{tpu_custom_call.1} parent=51 // pred_region
          %s2206 = sand.u32 %s148, 1
          %s2207 = scalar_lea.sflag [#allocation5], %s2206
          %s2208 = sand.u32 %s148, 1
          %s2209 = scalar_lea.vmem [#allocation4], %s2208
          %2211 = dma.done %s2207, 16
        $region60: #{tpu_custom_call.1} parent=51 // pred_fallthru
          _
        // Predicated region
        $region61: #{tpu_custom_call.1} parent=51 // pred_check
          %p2212 = pneg %p189
        $region62: #{tpu_custom_call.1} parent=51 // pred_check_branch
          %2214 = sbr.rel (%p2212) target = $region64
        $region63: #{tpu_custom_call.1} parent=51 // pred_region
          %s2215 = sand.u32 %s174, 1
          %s2216 = scalar_lea.sflag [#allocation7], %s2215
          %s2217 = sand.u32 %s174, 1
          %s2218 = scalar_lea.vmem [#allocation6], %s2217
          %2220 = dma.done %s2216, 16
        $region64: #{tpu_custom_call.1} parent=51 // pred_fallthru
          _
      $region52: #{tpu_custom_call.1} parent=5 // pred_fallthru
        _
    $region6: #{tpu_custom_call.1} parent=1 // loop_footer
      %s23 = sadd.s32 1, %s19
    $region7: #{tpu_custom_call.1} parent=1 // loop_footer_branch
      %18 = sbr.rel target = $region3
    $region8: #{tpu_custom_call.1} parent=1 // loop_exit
      _
    %2221 = vsyncpa [#allocation5], 1
    %s2222 = scalar_lea.sflag [#allocation5], 1
    %2223 = vsyncpa %s2222, 1
    %2224 = vsyncpa [#allocation7], 1
    %s2225 = scalar_lea.sflag [#allocation7], 1
    %2226 = vsyncpa %s2225, 1

</llo_original>
